<compile_context>
chip_gen: v7x
topology: tpu7x:2x2x1
jax: 0.10.0
libtpu: 0.0.40
codegen_flags: <defaults>
</compile_context>

<pallas_src>
import functools

import jax
import jax.numpy as jnp
from jax.experimental import pallas as pl
from jax.experimental.pallas import tpu as pltpu

NEG_INF = -1e30
GSUM_W = 16          # packed gate-sum lane width: [img E | txt E | fuse 2 | pad]


# ----------------------------------------------------------------------------
# Fused kernel: image MoE + text MoE + modality-fusion gate
# ----------------------------------------------------------------------------
def _topk2_weights(logits, num_experts):
    """torch.topk(k=2)+softmax expressed with masks; lowest index wins ties."""
    lane = jax.lax.broadcasted_iota(jnp.int32, logits.shape, dimension=1)  # (T, E)

    max1 = jnp.max(logits, axis=-1, keepdims=True)
    is1 = logits == max1
    idx1 = jnp.min(jnp.where(is1, lane, num_experts), axis=-1, keepdims=True)
    mask1 = lane == idx1                                   # one-hot argmax-1

    masked = jnp.where(mask1, NEG_INF, logits)
    max2 = jnp.max(masked, axis=-1, keepdims=True)
    is2 = masked == max2
    idx2 = jnp.min(jnp.where(is2, lane, num_experts), axis=-1, keepdims=True)
    mask2 = lane == idx2                                   # one-hot argmax-2

    # softmax over the two selected logits (max1 >= max2 -> stable)
    e2 = jnp.exp(max2 - max1)
    inv = pl.reciprocal(1.0 + e2, approx=True)
    return inv * mask1.astype(jnp.float32) + (e2 * inv) * mask2.astype(jnp.float32)


def mome_kernel(xcat_ref, wbig_ref, bbig_ref, sel_ref,
                g1a_ref, g1b_ref, gb1_ref, g2_ref, gb2_ref,
                emb_ref, gsum_ref, *, num_experts, emb_dim):
    e, d = num_experts, emb_dim
    ed = e * d

    x = xcat_ref[...]                                      # (T, Fi+Ft)
    # One block-diagonal matmul for both modalities' experts + gate projections.
    out_all = (jnp.dot(x, wbig_ref[...], preferred_element_type=jnp.float32)
               + bbig_ref[...])                            # (T, 2*ed + 2*e)

    sel = sel_ref[...]                                     # (E, E*D) 0/1 selector

    def moe(oe, logits):
        # Full softmax over experts (importance loss) -> per-expert column sums.
        mx = jnp.max(logits, axis=-1, keepdims=True)
        ex = jnp.exp(logits - mx)
        gates = ex * pl.reciprocal(jnp.sum(ex, axis=-1, keepdims=True), approx=True)
        gsum = jnp.sum(gates, axis=0, keepdims=True)       # (1, E)

        wexp = _topk2_weights(logits, e)                   # (T, E)
        # Spread per-expert weights to their D lanes on the MXU ...
        wfull = jnp.dot(wexp, sel, preferred_element_type=jnp.float32)  # (T, E*D)
        y = oe * wfull
        # ... and reduce the E D-lane blocks with XLU roll-adds (log2(E) steps).
        step = ed // 2
        while step >= d:
            y = y + pltpu.roll(y, shift=ed - step, axis=1)
            step //= 2
        return y[:, 0:d], gsum

    oe_img = out_all[:, 0:ed]
    oe_txt = out_all[:, ed:2 * ed]
    gl_img = out_all[:, 2 * ed:2 * ed + e]
    gl_txt = out_all[:, 2 * ed + e:2 * ed + 2 * e]

    img_e, gs_img = moe(oe_img, gl_img)
    txt_e, gs_txt = moe(oe_txt, gl_txt)

    # Fusion gate: Linear(2D->D) on concat == img@W1a + txt@W1b ; ReLU ; Linear(D->2).
    h = (jnp.dot(img_e, g1a_ref[...], preferred_element_type=jnp.float32)
         + jnp.dot(txt_e, g1b_ref[...], preferred_element_type=jnp.float32)
         + gb1_ref[...])
    h = jnp.maximum(h, 0.0)
    # TODO(synk): Dropout(0.1) inside the fusion gate runs as identity (eval mode).
    logits = jnp.dot(h, g2_ref[...], preferred_element_type=jnp.float32) + gb2_ref[...]
    mx = jnp.max(logits, axis=-1, keepdims=True)
    ex = jnp.exp(logits - mx)
    gw = ex * pl.reciprocal(jnp.sum(ex, axis=-1, keepdims=True), approx=True)  # (T, 2)
    gs_fuse = jnp.sum(gw, axis=0, keepdims=True)                               # (1, 2)
    item_e = gw[:, 0:1] * img_e + gw[:, 1:2] * txt_e

    # One lane-dense, zero-padded (T, 4D) output slab: [img | txt | item | pad].
    emb_ref[:, 0:d] = img_e
    emb_ref[:, d:2 * d] = txt_e
    emb_ref[:, 2 * d:3 * d] = item_e
    emb_ref[:, 3 * d:4 * d] = jnp.zeros_like(img_e)

    # Packed per-tile gate-sum partials: [img E | txt E | fuse 2 | pad].
    gsum_ref[...] = jnp.zeros_like(gsum_ref)
    gsum_ref[0, :, 0:e] = gs_img
    gsum_ref[0, :, e:2 * e] = gs_txt
    gsum_ref[0, :, 2 * e:2 * e + 2] = gs_fuse


def mome_pallas(params, x_cat, *, tile=None):
    n, fcat = x_cat.shape
    sel = params["selector"]
    e = sel.shape[0]
    d = sel.shape[1] // e
    assert e & (e - 1) == 0, "roll-reduce assumes a power-of-two expert count"
    assert 2 * e + 2 <= GSUM_W
    ed = e * d
    wtot = 2 * ed + 2 * e
    slab_w = 4 * d
    gate = params["gate"]

    if tile is None:
        # Cap the row tile so larger batches keep grid > 1 (DMA/compute overlap)
        # while the demo batch stays a single grid step.
        tile = n if n <= 256 else 256
    assert n % tile == 0, "batch must be divisible by the row tile"
    grid = n // tile

    kernel = functools.partial(mome_kernel, num_experts=e, emb_dim=d)
    full = lambda i: (0, 0)
    row = lambda i: (i, 0)

    return pl.pallas_call(
        kernel,
        out_shape=(jax.ShapeDtypeStruct((n, slab_w), jnp.float32),       # emb slab
                   jax.ShapeDtypeStruct((grid, 1, GSUM_W), jnp.float32)),  # gate sums
        grid=(grid,),
        in_specs=[
            pl.BlockSpec((tile, fcat), row),      # concat(image, text) features
            pl.BlockSpec((fcat, wtot), full),     # block-diag fused expert+gate W
            pl.BlockSpec((1, wtot), full),        # fused bias
            pl.BlockSpec((e, ed), full),          # expert -> lane selector
            pl.BlockSpec((d, d), full),           # fusion gate W1 (image half)
            pl.BlockSpec((d, d), full),           # fusion gate W1 (text half)
            pl.BlockSpec((1, d), full),           # fusion gate b1
            pl.BlockSpec((d, 2), full),           # fusion gate W2
            pl.BlockSpec((1, 2), full),           # fusion gate b2
        ],
        out_specs=(pl.BlockSpec((tile, slab_w), row),
                   pl.BlockSpec((1, 1, GSUM_W), lambda i: (i, 0, 0))),
        # Per-tile partial gate sums -> no cross-step state -> row axis is
        # fully parallel (megacore-safe on v7x).
        compiler_params=pltpu.CompilerParams(dimension_semantics=("parallel",)),
    )(x_cat, params["w_big"], params["b_big"], sel,
      gate["w1a"], gate["w1b"], gate["b1"], gate["w2"], gate["b2"])


# ----------------------------------------------------------------------------
# Glue: parameter init / packing, L2-normalize, KL-to-uniform reductions
# ----------------------------------------------------------------------------
def l2_normalize(x, eps=1e-12):
    norm = jnp.sqrt(jnp.sum(x * x, axis=1, keepdims=True))
    return x / jnp.maximum(norm, eps)


def kl_to_uniform(p, eps=1e-20):
    # F.kl_div(p.log(), uniform, reduction='sum') = sum(t * (log t - log p)).
    k = p.shape[-1]
    t = 1.0 / k
    return jnp.sum(t * (jnp.log(t) - jnp.log(jnp.maximum(p, eps))))


def linear_init(key, fan_in, fan_out):
    # matches torch.nn.Linear default U(-1/sqrt(fan_in), 1/sqrt(fan_in))
    kw, kb = jax.random.split(key)
    bound = 1.0 / jnp.sqrt(jnp.float32(fan_in))
    w = jax.random.uniform(kw, (fan_in, fan_out), jnp.float32, -bound, bound)
    b = jax.random.uniform(kb, (1, fan_out), jnp.float32, -bound, bound)
    return w, b


def init_moe_weights(key, input_dim, output_dim, num_experts):
    keys = jax.random.split(key, num_experts + 1)
    ws, bs = [], []
    for i in range(num_experts):
        w, b = linear_init(keys[i], input_dim, output_dim)
        ws.append(w)
        bs.append(b)
    wg, bg = linear_init(keys[-1], input_dim, num_experts)
    # Expert i owns output columns [i*D, (i+1)*D).
    return (jnp.concatenate(ws, axis=-1), jnp.concatenate(bs, axis=-1), wg, bg)


def init_params(key, n_user, emb_dim, img_dim, txt_dim, num_experts=4):
    k_u, k_i, k_t, k_g1, k_g2 = jax.random.split(key, 5)
    wi_all, bi_all, wgi, bgi = init_moe_weights(k_i, img_dim, emb_dim, num_experts)
    wt_all, bt_all, wgt, bgt = init_moe_weights(k_t, txt_dim, emb_dim, num_experts)

    e, d = num_experts, emb_dim
    ed = e * d
    fcat = img_dim + txt_dim
    wtot = 2 * ed + 2 * e
    # Block-diagonal fused weight: [img experts | txt experts | img gate | txt gate].
    w_big = jnp.zeros((fcat, wtot), jnp.float32)
    w_big = w_big.at[:img_dim, 0:ed].set(wi_all)
    w_big = w_big.at[img_dim:, ed:2 * ed].set(wt_all)
    w_big = w_big.at[:img_dim, 2 * ed:2 * ed + e].set(wgi)
    w_big = w_big.at[img_dim:, 2 * ed + e:wtot].set(wgt)
    b_big = jnp.concatenate([bi_all, bt_all, bgi, bgt], axis=-1)

    # 0/1 selector spreading each expert's scalar weight over its D output lanes.
    selector = jnp.kron(jnp.eye(e, dtype=jnp.float32), jnp.ones((1, d), jnp.float32))

    w1, b1 = linear_init(k_g1, 2 * emb_dim, emb_dim)
    w2, b2 = linear_init(k_g2, emb_dim, 2)
    return {
        "user_emb": 0.1 * jax.random.normal(k_u, (n_user, emb_dim), jnp.float32),
        "w_big": w_big,
        "b_big": b_big,
        "selector": selector,
        "gate": dict(w1a=w1[:emb_dim], w1b=w1[emb_dim:], b1=b1, w2=w2, b2=b2),
    }


@functools.partial(jax.jit, static_argnames=("tile",))
def mome_forward(params, image_feat, text_feat, tile=None):
    n = image_feat.shape[0]
    e = params["selector"].shape[0]
    d = params["selector"].shape[1] // e

    x_cat = jnp.concatenate([l2_normalize(image_feat), l2_normalize(text_feat)], axis=1)
    emb_slab, gsum = mome_pallas(params, x_cat, tile=tile)

    image_emb = emb_slab[:, 0:d]
    text_emb = emb_slab[:, d:2 * d]
    item_emb = emb_slab[:, 2 * d:3 * d]

    gtot = jnp.sum(gsum, axis=(0, 1)) / n                  # mean gate probs
    image_aux = kl_to_uniform(gtot[0:e])
    text_aux = kl_to_uniform(gtot[e:2 * e])
    balance_loss = kl_to_uniform(gtot[2 * e:2 * e + 2])

    return (params["user_emb"], item_emb, image_emb, text_emb,
            image_aux + text_aux, balance_loss)


if __name__ == "__main__":
    # Small synthetic shapes consistent with the module's forward.
    n_user = 6
    m_item = 64
    emb_dim = 32          # free_emb_dimension (4 experts * 32 = 128 lanes)
    img_dim = 64          # image_feat.shape[1]
    txt_dim = 48          # text_feat.shape[1]

    key = jax.random.PRNGKey(0)
    k_p, k_img, k_txt = jax.random.split(key, 3)
    params = init_params(k_p, n_user, emb_dim, img_dim, txt_dim, num_experts=4)
    image_feat = jax.random.normal(k_img, (m_item, img_dim), jnp.float32)
    text_feat = jax.random.normal(k_txt, (m_item, txt_dim), jnp.float32)

    outs = mome_forward(params, image_feat, text_feat)
    outs = jax.block_until_ready(outs)

    user_emb, item_emb, image_emb, text_emb, aux_loss, balance_loss = outs
    assert user_emb.shape == (n_user, emb_dim)
    assert item_emb.shape == (m_item, emb_dim)
    assert image_emb.shape == (m_item, emb_dim)
    assert text_emb.shape == (m_item, emb_dim)
    assert aux_loss.shape == () and balance_loss.shape == ()
    assert bool(jnp.isfinite(aux_loss)) and bool(jnp.isfinite(balance_loss))
    print("KERNEL_OK")
</pallas_src>

<mosaic_0001>
module attributes {stable_mosaic.version = 11 : i64} {
  func.func @mome_kernel(%arg0: i32, %arg1: memref<64x112xf32, #tpu.memory_space<vmem>>, %arg2: memref<112x264xf32, #tpu.memory_space<vmem>>, %arg3: memref<1x264xf32, #tpu.memory_space<vmem>>, %arg4: memref<4x128xf32, #tpu.memory_space<vmem>>, %arg5: memref<32x32xf32, #tpu.memory_space<vmem>>, %arg6: memref<32x32xf32, #tpu.memory_space<vmem>>, %arg7: memref<1x32xf32, #tpu.memory_space<vmem>>, %arg8: memref<32x2xf32, #tpu.memory_space<vmem>>, %arg9: memref<1x2xf32, #tpu.memory_space<vmem>>, %arg10: memref<64x128xf32, #tpu.memory_space<vmem>>, %arg11: memref<1x1x16xf32, #tpu.memory_space<vmem>>) attributes {dimension_semantics = [#tpu.dimension_semantics<parallel>], iteration_bounds = array<i64: 1>, scalar_prefetch = 0 : i64, scratch_operands = 0 : i64, tpu.core_type = #tpu.core_type<tc>, window_params = [{transform_indices = @transform_0, window_bounds = array<i64: 64, 112>}, {pipeline_mode = #tpu.pipeline_mode<synchronous>, transform_indices = @transform_1, window_bounds = array<i64: 112, 264>}, {pipeline_mode = #tpu.pipeline_mode<synchronous>, transform_indices = @transform_2, window_bounds = array<i64: 1, 264>}, {pipeline_mode = #tpu.pipeline_mode<synchronous>, transform_indices = @transform_3, window_bounds = array<i64: 4, 128>}, {pipeline_mode = #tpu.pipeline_mode<synchronous>, transform_indices = @transform_4, window_bounds = array<i64: 32, 32>}, {pipeline_mode = #tpu.pipeline_mode<synchronous>, transform_indices = @transform_5, window_bounds = array<i64: 32, 32>}, {pipeline_mode = #tpu.pipeline_mode<synchronous>, transform_indices = @transform_6, window_bounds = array<i64: 1, 32>}, {pipeline_mode = #tpu.pipeline_mode<synchronous>, transform_indices = @transform_7, window_bounds = array<i64: 32, 2>}, {pipeline_mode = #tpu.pipeline_mode<synchronous>, transform_indices = @transform_8, window_bounds = array<i64: 1, 2>}, {transform_indices = @transform_9, window_bounds = array<i64: 64, 128>}, {transform_indices = @transform_10, window_bounds = array<i64: 1, 1, 16>}]} {
    %c0 = arith.constant 0 : index
    %c0_0 = arith.constant 0 : index
    %0 = vector.load %arg1[%c0, %c0_0] : memref<64x112xf32, #tpu.memory_space<vmem>>, vector<64x112xf32>
    %c0_1 = arith.constant 0 : index
    %c0_2 = arith.constant 0 : index
    %1 = vector.load %arg2[%c0_1, %c0_2] : memref<112x264xf32, #tpu.memory_space<vmem>>, vector<112x264xf32>
    %cst = arith.constant dense<0.000000e+00> : vector<64x264xf32>
    %2 = tpu.matmul %0, %1, %cst {dimension_numbers = #tpu.dot_dimension_numbers<[1], [0], [0], [1], [0, 0, 1, 1], [], []>} : vector<64x112xf32>, vector<112x264xf32>, vector<64x264xf32> -> vector<64x264xf32>
    %c0_3 = arith.constant 0 : index
    %c0_4 = arith.constant 0 : index
    %3 = vector.load %arg3[%c0_3, %c0_4] : memref<1x264xf32, #tpu.memory_space<vmem>>, vector<1x264xf32>
    %4 = vector.broadcast %3 : vector<1x264xf32> to vector<64x264xf32>
    %5 = arith.addf %2, %4 : vector<64x264xf32>
    %c0_5 = arith.constant 0 : index
    %c0_6 = arith.constant 0 : index
    %6 = vector.load %arg4[%c0_5, %c0_6] : memref<4x128xf32, #tpu.memory_space<vmem>>, vector<4x128xf32>
    %7 = vector.extract_strided_slice %5 {offsets = [0, 0], sizes = [64, 128], strides = [1, 1]} : vector<64x264xf32> to vector<64x128xf32>
    %8 = vector.extract_strided_slice %5 {offsets = [0, 128], sizes = [64, 128], strides = [1, 1]} : vector<64x264xf32> to vector<64x128xf32>
    %9 = vector.extract_strided_slice %5 {offsets = [0, 256], sizes = [64, 4], strides = [1, 1]} : vector<64x264xf32> to vector<64x4xf32>
    %10 = vector.extract_strided_slice %5 {offsets = [0, 260], sizes = [64, 4], strides = [1, 1]} : vector<64x264xf32> to vector<64x4xf32>
    %cst_7 = arith.constant dense<0xFF800000> : vector<64xf32>
    %11 = vector.multi_reduction <maximumf>, %9, %cst_7 [1] : vector<64x4xf32> to vector<64xf32>
    %12 = vector.shape_cast %11 : vector<64xf32> to vector<64x1xf32>
    %13 = vector.broadcast %12 : vector<64x1xf32> to vector<64x4xf32>
    %14 = arith.subf %9, %13 : vector<64x4xf32>
    %15 = math.exp %14 : vector<64x4xf32>
    %cst_8 = arith.constant dense<0.000000e+00> : vector<64xf32>
    %16 = vector.multi_reduction <add>, %15, %cst_8 [1] : vector<64x4xf32> to vector<64xf32>
    %17 = vector.shape_cast %16 : vector<64xf32> to vector<64x1xf32>
    %18 = tpu.reciprocal %17 {approx = true} : vector<64x1xf32> -> vector<64x1xf32>
    %19 = vector.broadcast %18 : vector<64x1xf32> to vector<64x4xf32>
    %20 = arith.mulf %15, %19 : vector<64x4xf32>
    %cst_9 = arith.constant dense<0.000000e+00> : vector<4xf32>
    %21 = vector.multi_reduction <add>, %20, %cst_9 [0] : vector<64x4xf32> to vector<4xf32>
    %22 = vector.shape_cast %21 : vector<4xf32> to vector<1x4xf32>
    %23 = tpu.iota {dimensions = array<i32: 1>} : vector<64x4xi32>
    %cst_10 = arith.constant dense<0xFF800000> : vector<64xf32>
    %24 = vector.multi_reduction <maximumf>, %9, %cst_10 [1] : vector<64x4xf32> to vector<64xf32>
    %25 = vector.shape_cast %24 : vector<64xf32> to vector<64x1xf32>
    %26 = vector.broadcast %25 : vector<64x1xf32> to vector<64x4xf32>
    %27 = arith.cmpf oeq, %9, %26 : vector<64x4xf32>
    %c4_i32 = arith.constant 4 : i32
    %28 = vector.broadcast %c4_i32 : i32 to vector<64x4xi32>
    %29 = arith.select %27, %23, %28 : vector<64x4xi1>, vector<64x4xi32>
    %cst_11 = arith.constant dense<2147483647> : vector<64xi32>
    %30 = vector.multi_reduction <minsi>, %29, %cst_11 [1] : vector<64x4xi32> to vector<64xi32>
    %31 = vector.shape_cast %30 : vector<64xi32> to vector<64x1xi32>
    %32 = vector.broadcast %31 : vector<64x1xi32> to vector<64x4xi32>
    %33 = arith.cmpi eq, %23, %32 : vector<64x4xi32>
    %cst_12 = arith.constant -1.000000e+30 : f32
    %34 = vector.broadcast %cst_12 : f32 to vector<64x4xf32>
    %35 = arith.select %33, %34, %9 : vector<64x4xi1>, vector<64x4xf32>
    %cst_13 = arith.constant dense<0xFF800000> : vector<64xf32>
    %36 = vector.multi_reduction <maximumf>, %35, %cst_13 [1] : vector<64x4xf32> to vector<64xf32>
    %37 = vector.shape_cast %36 : vector<64xf32> to vector<64x1xf32>
    %38 = vector.broadcast %37 : vector<64x1xf32> to vector<64x4xf32>
    %39 = arith.cmpf oeq, %35, %38 : vector<64x4xf32>
    %c4_i32_14 = arith.constant 4 : i32
    %40 = vector.broadcast %c4_i32_14 : i32 to vector<64x4xi32>
    %41 = arith.select %39, %23, %40 : vector<64x4xi1>, vector<64x4xi32>
    %cst_15 = arith.constant dense<2147483647> : vector<64xi32>
    %42 = vector.multi_reduction <minsi>, %41, %cst_15 [1] : vector<64x4xi32> to vector<64xi32>
    %43 = vector.shape_cast %42 : vector<64xi32> to vector<64x1xi32>
    %44 = vector.broadcast %43 : vector<64x1xi32> to vector<64x4xi32>
    %45 = arith.cmpi eq, %23, %44 : vector<64x4xi32>
    %46 = arith.subf %37, %25 : vector<64x1xf32>
    %47 = math.exp %46 : vector<64x1xf32>
    %cst_16 = arith.constant 1.000000e+00 : f32
    %48 = vector.broadcast %cst_16 : f32 to vector<64x1xf32>
    %49 = arith.addf %48, %47 : vector<64x1xf32>
    %50 = tpu.reciprocal %49 {approx = true} : vector<64x1xf32> -> vector<64x1xf32>
    %51 = arith.extui %33 : vector<64x4xi1> to vector<64x4xi32>
    %52 = arith.sitofp %51 : vector<64x4xi32> to vector<64x4xf32>
    %53 = vector.broadcast %50 : vector<64x1xf32> to vector<64x4xf32>
    %54 = arith.mulf %53, %52 : vector<64x4xf32>
    %55 = arith.mulf %47, %50 : vector<64x1xf32>
    %56 = arith.extui %45 : vector<64x4xi1> to vector<64x4xi32>
    %57 = arith.sitofp %56 : vector<64x4xi32> to vector<64x4xf32>
    %58 = vector.broadcast %55 : vector<64x1xf32> to vector<64x4xf32>
    %59 = arith.mulf %58, %57 : vector<64x4xf32>
    %60 = arith.addf %54, %59 : vector<64x4xf32>
    %cst_17 = arith.constant dense<0.000000e+00> : vector<64x128xf32>
    %61 = tpu.matmul %60, %6, %cst_17 {dimension_numbers = #tpu.dot_dimension_numbers<[1], [0], [0], [1], [0, 0, 1, 1], [], []>} : vector<64x4xf32>, vector<4x128xf32>, vector<64x128xf32> -> vector<64x128xf32>
    %62 = arith.mulf %7, %61 : vector<64x128xf32>
    %c64_i32 = arith.constant 64 : i32
    %63 = tpu.dynamic_rotate %62 by %c64_i32 dim 1 : vector<64x128xf32>, i32 -> vector<64x128xf32>
    %64 = arith.addf %62, %63 : vector<64x128xf32>
    %c96_i32 = arith.constant 96 : i32
    %65 = tpu.dynamic_rotate %64 by %c96_i32 dim 1 : vector<64x128xf32>, i32 -> vector<64x128xf32>
    %66 = arith.addf %64, %65 : vector<64x128xf32>
    %67 = vector.extract_strided_slice %66 {offsets = [0, 0], sizes = [64, 32], strides = [1, 1]} : vector<64x128xf32> to vector<64x32xf32>
    %cst_18 = arith.constant dense<0xFF800000> : vector<64xf32>
    %68 = vector.multi_reduction <maximumf>, %10, %cst_18 [1] : vector<64x4xf32> to vector<64xf32>
    %69 = vector.shape_cast %68 : vector<64xf32> to vector<64x1xf32>
    %70 = vector.broadcast %69 : vector<64x1xf32> to vector<64x4xf32>
    %71 = arith.subf %10, %70 : vector<64x4xf32>
    %72 = math.exp %71 : vector<64x4xf32>
    %cst_19 = arith.constant dense<0.000000e+00> : vector<64xf32>
    %73 = vector.multi_reduction <add>, %72, %cst_19 [1] : vector<64x4xf32> to vector<64xf32>
    %74 = vector.shape_cast %73 : vector<64xf32> to vector<64x1xf32>
    %75 = tpu.reciprocal %74 {approx = true} : vector<64x1xf32> -> vector<64x1xf32>
    %76 = vector.broadcast %75 : vector<64x1xf32> to vector<64x4xf32>
    %77 = arith.mulf %72, %76 : vector<64x4xf32>
    %cst_20 = arith.constant dense<0.000000e+00> : vector<4xf32>
    %78 = vector.multi_reduction <add>, %77, %cst_20 [0] : vector<64x4xf32> to vector<4xf32>
    %79 = vector.shape_cast %78 : vector<4xf32> to vector<1x4xf32>
    %80 = tpu.iota {dimensions = array<i32: 1>} : vector<64x4xi32>
    %cst_21 = arith.constant dense<0xFF800000> : vector<64xf32>
    %81 = vector.multi_reduction <maximumf>, %10, %cst_21 [1] : vector<64x4xf32> to vector<64xf32>
    %82 = vector.shape_cast %81 : vector<64xf32> to vector<64x1xf32>
    %83 = vector.broadcast %82 : vector<64x1xf32> to vector<64x4xf32>
    %84 = arith.cmpf oeq, %10, %83 : vector<64x4xf32>
    %c4_i32_22 = arith.constant 4 : i32
    %85 = vector.broadcast %c4_i32_22 : i32 to vector<64x4xi32>
    %86 = arith.select %84, %80, %85 : vector<64x4xi1>, vector<64x4xi32>
    %cst_23 = arith.constant dense<2147483647> : vector<64xi32>
    %87 = vector.multi_reduction <minsi>, %86, %cst_23 [1] : vector<64x4xi32> to vector<64xi32>
    %88 = vector.shape_cast %87 : vector<64xi32> to vector<64x1xi32>
    %89 = vector.broadcast %88 : vector<64x1xi32> to vector<64x4xi32>
    %90 = arith.cmpi eq, %80, %89 : vector<64x4xi32>
    %cst_24 = arith.constant -1.000000e+30 : f32
    %91 = vector.broadcast %cst_24 : f32 to vector<64x4xf32>
    %92 = arith.select %90, %91, %10 : vector<64x4xi1>, vector<64x4xf32>
    %cst_25 = arith.constant dense<0xFF800000> : vector<64xf32>
    %93 = vector.multi_reduction <maximumf>, %92, %cst_25 [1] : vector<64x4xf32> to vector<64xf32>
    %94 = vector.shape_cast %93 : vector<64xf32> to vector<64x1xf32>
    %95 = vector.broadcast %94 : vector<64x1xf32> to vector<64x4xf32>
    %96 = arith.cmpf oeq, %92, %95 : vector<64x4xf32>
    %c4_i32_26 = arith.constant 4 : i32
    %97 = vector.broadcast %c4_i32_26 : i32 to vector<64x4xi32>
    %98 = arith.select %96, %80, %97 : vector<64x4xi1>, vector<64x4xi32>
    %cst_27 = arith.constant dense<2147483647> : vector<64xi32>
    %99 = vector.multi_reduction <minsi>, %98, %cst_27 [1] : vector<64x4xi32> to vector<64xi32>
    %100 = vector.shape_cast %99 : vector<64xi32> to vector<64x1xi32>
    %101 = vector.broadcast %100 : vector<64x1xi32> to vector<64x4xi32>
    %102 = arith.cmpi eq, %80, %101 : vector<64x4xi32>
    %103 = arith.subf %94, %82 : vector<64x1xf32>
    %104 = math.exp %103 : vector<64x1xf32>
    %cst_28 = arith.constant 1.000000e+00 : f32
    %105 = vector.broadcast %cst_28 : f32 to vector<64x1xf32>
    %106 = arith.addf %105, %104 : vector<64x1xf32>
    %107 = tpu.reciprocal %106 {approx = true} : vector<64x1xf32> -> vector<64x1xf32>
    %108 = arith.extui %90 : vector<64x4xi1> to vector<64x4xi32>
    %109 = arith.sitofp %108 : vector<64x4xi32> to vector<64x4xf32>
    %110 = vector.broadcast %107 : vector<64x1xf32> to vector<64x4xf32>
    %111 = arith.mulf %110, %109 : vector<64x4xf32>
    %112 = arith.mulf %104, %107 : vector<64x1xf32>
    %113 = arith.extui %102 : vector<64x4xi1> to vector<64x4xi32>
    %114 = arith.sitofp %113 : vector<64x4xi32> to vector<64x4xf32>
    %115 = vector.broadcast %112 : vector<64x1xf32> to vector<64x4xf32>
    %116 = arith.mulf %115, %114 : vector<64x4xf32>
    %117 = arith.addf %111, %116 : vector<64x4xf32>
    %cst_29 = arith.constant dense<0.000000e+00> : vector<64x128xf32>
    %118 = tpu.matmul %117, %6, %cst_29 {dimension_numbers = #tpu.dot_dimension_numbers<[1], [0], [0], [1], [0, 0, 1, 1], [], []>} : vector<64x4xf32>, vector<4x128xf32>, vector<64x128xf32> -> vector<64x128xf32>
    %119 = arith.mulf %8, %118 : vector<64x128xf32>
    %c64_i32_30 = arith.constant 64 : i32
    %120 = tpu.dynamic_rotate %119 by %c64_i32_30 dim 1 : vector<64x128xf32>, i32 -> vector<64x128xf32>
    %121 = arith.addf %119, %120 : vector<64x128xf32>
    %c96_i32_31 = arith.constant 96 : i32
    %122 = tpu.dynamic_rotate %121 by %c96_i32_31 dim 1 : vector<64x128xf32>, i32 -> vector<64x128xf32>
    %123 = arith.addf %121, %122 : vector<64x128xf32>
    %124 = vector.extract_strided_slice %123 {offsets = [0, 0], sizes = [64, 32], strides = [1, 1]} : vector<64x128xf32> to vector<64x32xf32>
    %c0_32 = arith.constant 0 : index
    %c0_33 = arith.constant 0 : index
    %125 = vector.load %arg5[%c0_32, %c0_33] : memref<32x32xf32, #tpu.memory_space<vmem>>, vector<32x32xf32>
    %cst_34 = arith.constant dense<0.000000e+00> : vector<64x32xf32>
    %126 = tpu.matmul %67, %125, %cst_34 {dimension_numbers = #tpu.dot_dimension_numbers<[1], [0], [0], [1], [0, 0, 1, 1], [], []>} : vector<64x32xf32>, vector<32x32xf32>, vector<64x32xf32> -> vector<64x32xf32>
    %c0_35 = arith.constant 0 : index
    %c0_36 = arith.constant 0 : index
    %127 = vector.load %arg6[%c0_35, %c0_36] : memref<32x32xf32, #tpu.memory_space<vmem>>, vector<32x32xf32>
    %cst_37 = arith.constant dense<0.000000e+00> : vector<64x32xf32>
    %128 = tpu.matmul %124, %127, %cst_37 {dimension_numbers = #tpu.dot_dimension_numbers<[1], [0], [0], [1], [0, 0, 1, 1], [], []>} : vector<64x32xf32>, vector<32x32xf32>, vector<64x32xf32> -> vector<64x32xf32>
    %129 = arith.addf %126, %128 : vector<64x32xf32>
    %c0_38 = arith.constant 0 : index
    %c0_39 = arith.constant 0 : index
    %130 = vector.load %arg7[%c0_38, %c0_39] : memref<1x32xf32, #tpu.memory_space<vmem>>, vector<1x32xf32>
    %131 = vector.broadcast %130 : vector<1x32xf32> to vector<64x32xf32>
    %132 = arith.addf %129, %131 : vector<64x32xf32>
    %cst_40 = arith.constant 0.000000e+00 : f32
    %133 = vector.broadcast %cst_40 : f32 to vector<64x32xf32>
    %134 = arith.maximumf %132, %133 : vector<64x32xf32>
    %c0_41 = arith.constant 0 : index
    %c0_42 = arith.constant 0 : index
    %135 = vector.load %arg8[%c0_41, %c0_42] : memref<32x2xf32, #tpu.memory_space<vmem>>, vector<32x2xf32>
    %cst_43 = arith.constant dense<0.000000e+00> : vector<64x2xf32>
    %136 = tpu.matmul %134, %135, %cst_43 {dimension_numbers = #tpu.dot_dimension_numbers<[1], [0], [0], [1], [0, 0, 1, 1], [], []>} : vector<64x32xf32>, vector<32x2xf32>, vector<64x2xf32> -> vector<64x2xf32>
    %c0_44 = arith.constant 0 : index
    %c0_45 = arith.constant 0 : index
    %137 = vector.load %arg9[%c0_44, %c0_45] : memref<1x2xf32, #tpu.memory_space<vmem>>, vector<1x2xf32>
    %138 = vector.broadcast %137 : vector<1x2xf32> to vector<64x2xf32>
    %139 = arith.addf %136, %138 : vector<64x2xf32>
    %cst_46 = arith.constant dense<0xFF800000> : vector<64xf32>
    %140 = vector.multi_reduction <maximumf>, %139, %cst_46 [1] : vector<64x2xf32> to vector<64xf32>
    %141 = vector.shape_cast %140 : vector<64xf32> to vector<64x1xf32>
    %142 = vector.broadcast %141 : vector<64x1xf32> to vector<64x2xf32>
    %143 = arith.subf %139, %142 : vector<64x2xf32>
    %144 = math.exp %143 : vector<64x2xf32>
    %cst_47 = arith.constant dense<0.000000e+00> : vector<64xf32>
    %145 = vector.multi_reduction <add>, %144, %cst_47 [1] : vector<64x2xf32> to vector<64xf32>
    %146 = vector.shape_cast %145 : vector<64xf32> to vector<64x1xf32>
    %147 = tpu.reciprocal %146 {approx = true} : vector<64x1xf32> -> vector<64x1xf32>
    %148 = vector.broadcast %147 : vector<64x1xf32> to vector<64x2xf32>
    %149 = arith.mulf %144, %148 : vector<64x2xf32>
    %cst_48 = arith.constant dense<0.000000e+00> : vector<2xf32>
    %150 = vector.multi_reduction <add>, %149, %cst_48 [0] : vector<64x2xf32> to vector<2xf32>
    %151 = vector.shape_cast %150 : vector<2xf32> to vector<1x2xf32>
    %152 = vector.extract_strided_slice %149 {offsets = [0, 0], sizes = [64, 1], strides = [1, 1]} : vector<64x2xf32> to vector<64x1xf32>
    %153 = vector.broadcast %152 : vector<64x1xf32> to vector<64x32xf32>
    %154 = arith.mulf %153, %67 : vector<64x32xf32>
    %155 = vector.extract_strided_slice %149 {offsets = [0, 1], sizes = [64, 1], strides = [1, 1]} : vector<64x2xf32> to vector<64x1xf32>
    %156 = vector.broadcast %155 : vector<64x1xf32> to vector<64x32xf32>
    %157 = arith.mulf %156, %124 : vector<64x32xf32>
    %158 = arith.addf %154, %157 : vector<64x32xf32>
    %c0_49 = arith.constant 0 : index
    %c0_50 = arith.constant 0 : index
    %159 = vector.load %arg10[%c0_49, %c0_50] : memref<64x128xf32, #tpu.memory_space<vmem>>, vector<64x32xf32>
    tpu.vector_store %arg10[%c0_49, %c0_50], %67 {strides = array<i32>} : memref<64x128xf32, #tpu.memory_space<vmem>>, vector<64x32xf32>,
    %c0_51 = arith.constant 0 : index
    %c32 = arith.constant 32 : index
    %160 = vector.load %arg10[%c0_51, %c32] : memref<64x128xf32, #tpu.memory_space<vmem>>, vector<64x32xf32>
    tpu.vector_store %arg10[%c0_51, %c32], %124 {strides = array<i32>} : memref<64x128xf32, #tpu.memory_space<vmem>>, vector<64x32xf32>,
    %c0_52 = arith.constant 0 : index
    %c64 = arith.constant 64 : index
    %161 = vector.load %arg10[%c0_52, %c64] : memref<64x128xf32, #tpu.memory_space<vmem>>, vector<64x32xf32>
    tpu.vector_store %arg10[%c0_52, %c64], %158 {strides = array<i32>} : memref<64x128xf32, #tpu.memory_space<vmem>>, vector<64x32xf32>,
    %cst_53 = arith.constant 0.000000e+00 : f32
    %162 = vector.broadcast %cst_53 : f32 to vector<64x32xf32>
    %c0_54 = arith.constant 0 : index
    %c96 = arith.constant 96 : index
    %163 = vector.load %arg10[%c0_54, %c96] : memref<64x128xf32, #tpu.memory_space<vmem>>, vector<64x32xf32>
    tpu.vector_store %arg10[%c0_54, %c96], %162 {strides = array<i32>} : memref<64x128xf32, #tpu.memory_space<vmem>>, vector<64x32xf32>,
    %cst_55 = arith.constant 0.000000e+00 : f32
    %164 = vector.broadcast %cst_55 : f32 to vector<1x1x16xf32>
    %c0_56 = arith.constant 0 : index
    %c0_57 = arith.constant 0 : index
    %c0_58 = arith.constant 0 : index
    %165 = vector.load %arg11[%c0_56, %c0_57, %c0_58] : memref<1x1x16xf32, #tpu.memory_space<vmem>>, vector<1x1x16xf32>
    tpu.vector_store %arg11[%c0_56, %c0_57, %c0_58], %164 {strides = array<i32>} : memref<1x1x16xf32, #tpu.memory_space<vmem>>, vector<1x1x16xf32>,
    %c0_59 = arith.constant 0 : index
    %c0_60 = arith.constant 0 : index
    %c0_61 = arith.constant 0 : index
    %166 = vector.load %arg11[%c0_59, %c0_60, %c0_61] : memref<1x1x16xf32, #tpu.memory_space<vmem>>, vector<1x1x4xf32>
    %167 = vector.shape_cast %166 : vector<1x1x4xf32> to vector<1x4xf32>
    %168 = vector.shape_cast %22 : vector<1x4xf32> to vector<1x1x4xf32>
    tpu.vector_store %arg11[%c0_59, %c0_60, %c0_61], %168 {strides = array<i32>} : memref<1x1x16xf32, #tpu.memory_space<vmem>>, vector<1x1x4xf32>,
    %c0_62 = arith.constant 0 : index
    %c0_63 = arith.constant 0 : index
    %c4 = arith.constant 4 : index
    %169 = vector.load %arg11[%c0_62, %c0_63, %c4] : memref<1x1x16xf32, #tpu.memory_space<vmem>>, vector<1x1x4xf32>
    %170 = vector.shape_cast %169 : vector<1x1x4xf32> to vector<1x4xf32>
    %171 = vector.shape_cast %79 : vector<1x4xf32> to vector<1x1x4xf32>
    tpu.vector_store %arg11[%c0_62, %c0_63, %c4], %171 {strides = array<i32>} : memref<1x1x16xf32, #tpu.memory_space<vmem>>, vector<1x1x4xf32>,
    %c0_64 = arith.constant 0 : index
    %c0_65 = arith.constant 0 : index
    %c8 = arith.constant 8 : index
    %172 = vector.load %arg11[%c0_64, %c0_65, %c8] : memref<1x1x16xf32, #tpu.memory_space<vmem>>, vector<1x1x2xf32>
    %173 = vector.shape_cast %172 : vector<1x1x2xf32> to vector<1x2xf32>
    %174 = vector.shape_cast %151 : vector<1x2xf32> to vector<1x1x2xf32>
    tpu.vector_store %arg11[%c0_64, %c0_65, %c8], %174 {strides = array<i32>} : memref<1x1x16xf32, #tpu.memory_space<vmem>>, vector<1x1x2xf32>,
    return
  }
  func.func @transform_0(%arg0: i32) -> (i32, i32) {
    %c0_i32 = arith.constant 0 : i32
    %c0_i32_0 = arith.constant 0 : i32
    return %arg0, %c0_i32 : i32, i32
  }
  func.func @transform_1(%arg0: i32) -> (i32, i32) {
    %c0_i32 = arith.constant 0 : i32
    %c0_i32_0 = arith.constant 0 : i32
    %c0_i32_1 = arith.constant 0 : i32
    return %c0_i32, %c0_i32_0 : i32, i32
  }
  func.func @transform_2(%arg0: i32) -> (i32, i32) {
    %c0_i32 = arith.constant 0 : i32
    %c0_i32_0 = arith.constant 0 : i32
    %c0_i32_1 = arith.constant 0 : i32
    return %c0_i32, %c0_i32_0 : i32, i32
  }
  func.func @transform_3(%arg0: i32) -> (i32, i32) {
    %c0_i32 = arith.constant 0 : i32
    %c0_i32_0 = arith.constant 0 : i32
    %c0_i32_1 = arith.constant 0 : i32
    return %c0_i32, %c0_i32_0 : i32, i32
  }
  func.func @transform_4(%arg0: i32) -> (i32, i32) {
    %c0_i32 = arith.constant 0 : i32
    %c0_i32_0 = arith.constant 0 : i32
    %c0_i32_1 = arith.constant 0 : i32
    return %c0_i32, %c0_i32_0 : i32, i32
  }
  func.func @transform_5(%arg0: i32) -> (i32, i32) {
    %c0_i32 = arith.constant 0 : i32
    %c0_i32_0 = arith.constant 0 : i32
    %c0_i32_1 = arith.constant 0 : i32
    return %c0_i32, %c0_i32_0 : i32, i32
  }
  func.func @transform_6(%arg0: i32) -> (i32, i32) {
    %c0_i32 = arith.constant 0 : i32
    %c0_i32_0 = arith.constant 0 : i32
    %c0_i32_1 = arith.constant 0 : i32
    return %c0_i32, %c0_i32_0 : i32, i32
  }
  func.func @transform_7(%arg0: i32) -> (i32, i32) {
    %c0_i32 = arith.constant 0 : i32
    %c0_i32_0 = arith.constant 0 : i32
    %c0_i32_1 = arith.constant 0 : i32
    return %c0_i32, %c0_i32_0 : i32, i32
  }
  func.func @transform_8(%arg0: i32) -> (i32, i32) {
    %c0_i32 = arith.constant 0 : i32
    %c0_i32_0 = arith.constant 0 : i32
    %c0_i32_1 = arith.constant 0 : i32
    return %c0_i32, %c0_i32_0 : i32, i32
  }
  func.func @transform_9(%arg0: i32) -> (i32, i32) {
    %c0_i32 = arith.constant 0 : i32
    %c0_i32_0 = arith.constant 0 : i32
    return %arg0, %c0_i32 : i32, i32
  }
  func.func @transform_10(%arg0: i32) -> (i32, i32, i32) {
    %c0_i32 = arith.constant 0 : i32
    %c0_i32_0 = arith.constant 0 : i32
    %c0_i32_1 = arith.constant 0 : i32
    return %arg0, %c0_i32, %c0_i32_0 : i32, i32, i32
  }
}

</mosaic_0001>

<llo_original>
// kernel: mome_forward.1
$region0: #{mome_forward.1}
  #allocation0 [shape = 'u32[]', space=smem, size = 0x4, offset = 0x4, fixed_abs, tag = 'smem constant byte address 0x4 - core index']
  #allocation1 [shape = 'u32[144,128]{1,0:T(1,128)}', space=vmem, size = 0x12000, scoped, tag = 'internal scratch']
  %s0 = inlined_call_operand.vmem [shape: f32[64,112], index: 0, kind: input, shape index: {}]
  %s1 = inlined_call_operand.vmem [shape: f32[112,264], index: 1, kind: input, shape index: {}]
  %s2 = inlined_call_operand.vmem [shape: f32[1,264], index: 2, kind: input, shape index: {}]
  %s3 = inlined_call_operand.vmem [shape: f32[4,128], index: 3, kind: input, shape index: {}]
  %s4 = inlined_call_operand.vmem [shape: f32[32,32], index: 4, kind: input, shape index: {}]
  %s5 = inlined_call_operand.vmem [shape: f32[32,32], index: 5, kind: input, shape index: {}]
  %s6 = inlined_call_operand.vmem [shape: f32[1,32], index: 6, kind: input, shape index: {}]
  %s7 = inlined_call_operand.vmem [shape: f32[32,2], index: 7, kind: input, shape index: {}]
  %s8 = inlined_call_operand.vmem [shape: f32[1,2], index: 8, kind: input, shape index: {}]
  %s9 = inlined_call_operand.vmem [shape: f32[64,128], index: 9, kind: output, shape index: {0}]
  %s10 = inlined_call_operand.vmem [shape: f32[1,1,16], index: 10, kind: output, shape index: {1}]
  %11 = xla_tuple %s9, %s10
  %s12 = sld [smem:[#allocation0]]
  $region54: #{mome_forward.1} parent=0
    _
  %s14 = ssub.s32 1, %s12
  %s15 = scalar_select 0, %s14, %s12
  // Predicated region
  $region2: #{mome_forward.1} parent=0 // pred_check
    _
  $region3: #{mome_forward.1} parent=0 // pred_check_branch
    %17 = sbr.rel (0) target = $region5
  $region4: #{mome_forward.1} parent=0 // pred_region
    _
  $region5: #{mome_forward.1} parent=0 // pred_fallthru
    _
  // Predicated region
  $region6: #{mome_forward.1} parent=0 // pred_check
    _
  $region7: #{mome_forward.1} parent=0 // pred_check_branch
    %19 = sbr.rel (0) target = $region9
  $region8: #{mome_forward.1} parent=0 // pred_region
    _
  $region9: #{mome_forward.1} parent=0 // pred_fallthru
    _
  // Predicated region
  $region10: #{mome_forward.1} parent=0 // pred_check
    _
  $region11: #{mome_forward.1} parent=0 // pred_check_branch
    %21 = sbr.rel (0) target = $region13
  $region12: #{mome_forward.1} parent=0 // pred_region
    _
  $region13: #{mome_forward.1} parent=0 // pred_fallthru
    _
  // Predicated region
  $region14: #{mome_forward.1} parent=0 // pred_check
    _
  $region15: #{mome_forward.1} parent=0 // pred_check_branch
    %23 = sbr.rel (0) target = $region17
  $region16: #{mome_forward.1} parent=0 // pred_region
    _
  $region17: #{mome_forward.1} parent=0 // pred_fallthru
    _
  // Predicated region
  $region18: #{mome_forward.1} parent=0 // pred_check
    _
  $region19: #{mome_forward.1} parent=0 // pred_check_branch
    %25 = sbr.rel (0) target = $region21
  $region20: #{mome_forward.1} parent=0 // pred_region
    _
  $region21: #{mome_forward.1} parent=0 // pred_fallthru
    _
  // Predicated region
  $region22: #{mome_forward.1} parent=0 // pred_check
    _
  $region23: #{mome_forward.1} parent=0 // pred_check_branch
    %27 = sbr.rel (0) target = $region25
  $region24: #{mome_forward.1} parent=0 // pred_region
    _
  $region25: #{mome_forward.1} parent=0 // pred_fallthru
    _
  // Predicated region
  $region26: #{mome_forward.1} parent=0 // pred_check
    _
  $region27: #{mome_forward.1} parent=0 // pred_check_branch
    %29 = sbr.rel (0) target = $region29
  $region28: #{mome_forward.1} parent=0 // pred_region
    _
  $region29: #{mome_forward.1} parent=0 // pred_fallthru
    _
  // Predicated region
  $region30: #{mome_forward.1} parent=0 // pred_check
    _
  $region31: #{mome_forward.1} parent=0 // pred_check_branch
    %31 = sbr.rel (0) target = $region33
  $region32: #{mome_forward.1} parent=0 // pred_region
    _
  $region33: #{mome_forward.1} parent=0 // pred_fallthru
    _
  // Predicated region
  $region34: #{mome_forward.1} parent=0 // pred_check
    _
  $region35: #{mome_forward.1} parent=0 // pred_check_branch
    %33 = sbr.rel (0) target = $region37
  $region36: #{mome_forward.1} parent=0 // pred_region
    _
  $region37: #{mome_forward.1} parent=0 // pred_fallthru
    _
  %v34 = vld [vmem:[%s0] sm:$0xff]
  %v35 = vld [vmem:[%s0 + $0x8] sm:$0xff]
  %v36 = vld [vmem:[%s0 + $0x10] sm:$0xff]
  %v37 = vld [vmem:[%s0 + $0x18] sm:$0xff]
  %v38 = vld [vmem:[%s0 + $0x20] sm:$0xff]
  %v39 = vld [vmem:[%s0 + $0x28] sm:$0xff]
  %v40 = vld [vmem:[%s0 + $0x30] sm:$0xff]
  %v41 = vld [vmem:[%s0 + $0x38] sm:$0xff]
  %v42 = vld [vmem:[%s1] sm:$0xff]
  %v43 = vld [vmem:[%s1 + $0x8] sm:$0xff]
  %v44 = vld [vmem:[%s1 + $0x10] sm:$0xff]
  %v45 = vld [vmem:[%s1 + $0x18] sm:$0xff]
  %v46 = vld [vmem:[%s1 + $0x20] sm:$0xff]
  %v47 = vld [vmem:[%s1 + $0x28] sm:$0xff]
  %v48 = vld [vmem:[%s1 + $0x30] sm:$0xff]
  %v49 = vld [vmem:[%s1 + $0x38] sm:$0xff]
  %v50 = vld [vmem:[%s1 + $0x40] sm:$0xff]
  %v51 = vld [vmem:[%s1 + $0x48] sm:$0xff]
  %v52 = vld [vmem:[%s1 + $0x50] sm:$0xff]
  %v53 = vld [vmem:[%s1 + $0x58] sm:$0xff]
  %v54 = vld [vmem:[%s1 + $0x60] sm:$0xff]
  %v55 = vld [vmem:[%s1 + $0x68] sm:$0xff]
  %v56 = vld [vmem:[%s1 + $0x70] sm:$0xff]
  %v57 = vld [vmem:[%s1 + $0x78] sm:$0xff]
  %v58 = vld [vmem:[%s1 + $0x80] sm:$0xff]
  %v59 = vld [vmem:[%s1 + $0x88] sm:$0xff]
  %v60 = vld [vmem:[%s1 + $0x90] sm:$0xff]
  %v61 = vld [vmem:[%s1 + $0x98] sm:$0xff]
  %v62 = vld [vmem:[%s1 + $0xa0] sm:$0xff]
  %v63 = vld [vmem:[%s1 + $0xa8] sm:$0xff]
  %v64 = vld [vmem:[%s1 + $0xb0] sm:$0xff]
  %v65 = vld [vmem:[%s1 + $0xb8] sm:$0xff]
  %v66 = vld [vmem:[%s1 + $0xc0] sm:$0xff]
  %v67 = vld [vmem:[%s1 + $0xc8] sm:$0xff]
  %v68 = vld [vmem:[%s1 + $0xd0] sm:$0xff]
  %v69 = vld [vmem:[%s1 + $0xd8] sm:$0xff]
  %v70 = vld [vmem:[%s1 + $0xe0] sm:$0xff]
  %v71 = vld [vmem:[%s1 + $0xe8] sm:$0xff]
  %v72 = vld [vmem:[%s1 + $0xf0] sm:$0xff]
  %v73 = vld [vmem:[%s1 + $0xf8] sm:$0xff]
  %v74 = vld [vmem:[%s1 + $0x100] sm:$0xff]
  %v75 = vld [vmem:[%s1 + $0x108] sm:$0xff]
  %v76 = vld [vmem:[%s1 + $0x110] sm:$0xff]
  %v77 = vld [vmem:[%s1 + $0x118] sm:$0xff]
  %v78 = vld [vmem:[%s1 + $0x120] sm:$0xff]
  %v79 = vld [vmem:[%s1 + $0x128] sm:$0xff]
  %v80 = vld [vmem:[%s1 + $0x130] sm:$0xff]
  %v81 = vld [vmem:[%s1 + $0x138] sm:$0xff]
  %v82 = vld [vmem:[%s1 + $0x140] sm:$0xff]
  %v83 = vld [vmem:[%s1 + $0x148] sm:$0xff]
  %v84 = vld [vmem:[%s2] sm:$0x7]
  %v86 = vlaneseq
  %v87 = vshrl.u32 %v86, 7
  %v88 = vsub.s32 0, %v87
  %v89 = vrot.slane %v84, %v88
  %v90 = vlaneseq
  %v91 = vshrl.u32 %v90, 7
  %v92 = vsub.s32 1, %v91
  %v93 = vrot.slane %v84, %v92
  %v94 = vlaneseq
  %v95 = vshrl.u32 %v94, 7
  %v96 = vsub.s32 2, %v95
  %v97 = vrot.slane %v84, %v96
  %vm101 = vcmask 916480
  %v103 = vsel %vm101, %v34, 0
  %v106 = vsel %vm101, %v35, 0
  %v109 = vsel %vm101, %v36, 0
  %v112 = vsel %vm101, %v37, 0
  %v115 = vsel %vm101, %v38, 0
  %v118 = vsel %vm101, %v39, 0
  %v121 = vsel %vm101, %v40, 0
  %v124 = vsel %vm101, %v41, 0
  %126 = vmatprep.subr.mxu0 %v43
  %127 = vmatpush1.msra.mxu0 %v42
  %128 = vmatprep.subr.mxu0 %v46
  %129 = vmatpush1.msra.mxu0 %v45
  %130 = vmatprep.subr.mxu0 %v49
  %131 = vmatpush1.msra.mxu0 %v48
  %132 = vmatprep.subr.mxu0 %v52
  %133 = vmatpush1.msra.mxu0 %v51
  %134 = vmatprep.subr.mxu0 %v55
  %135 = vmatpush1.msra.mxu0 %v54
  %136 = vmatprep.subr.mxu0 %v58
  %137 = vmatpush1.msra.mxu0 %v57
  %138 = vmatprep.subr.mxu0 %v61
  %139 = vmatpush1.msra.mxu0 %v60
  %140 = vmatprep.subr.mxu0 %v64
  %141 = vmatpush1.msra.mxu0 %v63
  %142 = vmatprep.subr.mxu0 %v67
  %143 = vmatpush1.msra.mxu0 %v66
  %144 = vmatprep.subr.mxu0 %v70
  %145 = vmatpush1.msra.mxu0 %v69
  %146 = vmatprep.subr.mxu0 %v73
  %147 = vmatpush1.msra.mxu0 %v72
  %148 = vmatprep.subr.mxu0 %v76
  %149 = vmatpush1.msra.mxu0 %v75
  %150 = vmatprep.subr.mxu0 %v79
  %151 = vmatpush1.msra.mxu0 %v78
  %152 = vmatprep.subr.mxu0 %v82
  %153 = vmatpush1.msra.mxu0 %v81
  %154 = vmatprep.subr.mxu0 0.0
  %155 = vmatpush1.msra.mxu0 0.0
  %156 = vmatprep.subr.mxu0 0.0
  %157 = vmatpush1.msra.mxu0 0.0
  %158 = vmatprep.subr.mxu0 0.0
  %159 = vmatpush1.msra.mxu0 0.0
  %160 = vmatprep.subr.mxu0 0.0
  %161 = vmatpush1.msra.mxu0 0.0
  %162 = vmatprep.subr.mxu0 0.0
  %163 = vmatpush1.msra.mxu0 0.0
  %164 = vmatprep.subr.mxu0 0.0
  %165 = vmatpush1.msra.mxu0 0.0
  %166 = vmatprep.subr.mxu0 0.0
  %167 = vmatpush1.msra.mxu0 0.0
  %168 = vmatprep.subr.mxu0 0.0
  %169 = vmatpush1.msra.mxu0 0.0
  %170 = vmatprep.subr.mxu0 0.0
  %171 = vmatpush1.msra.mxu0 0.0
  %172 = vmatprep.subr.mxu0 0.0
  %173 = vmatpush1.msra.mxu0 0.0
  %174 = vmatprep.subr.mxu0 0.0
  %175 = vmatpush1.msra.mxu0 0.0
  %176 = vmatprep.subr.mxu0 0.0
  %177 = vmatpush1.msra.mxu0 0.0
  %178 = vmatprep.subr.mxu0 0.0
  %179 = vmatpush1.msra.mxu0 0.0
  %180 = vmatprep.subr.mxu0 0.0
  %181 = vmatpush1.msra.mxu0 0.0
  %182 = vmatprep.subr.mxu0 0.0
  %183 = vmatpush1.msra.mxu0 0.0
  %184 = vmatprep.subr.mxu0 0.0
  %185 = vmatpush1.msra.mxu0 0.0
  %186 = vmatprep.subr.mxu0 0.0
  %187 = vmatpush1.msra.mxu0 0.0
  %188 = vmatprep.subr.mxu0 0.0
  %189 = vmatpush1.msra.mxu0 0.0
  %190 = vmatprep.mubr.f32.mxu0 0.0
  %191 = vmatmul.mubr.f32.gmra.mrb[0].mxu0 %v103
  %v192 = vpop.f32.mrb[0].mxu0
  %v193 = vadd.f32 %v89, %v192
  %v194 = vpop.f32.mrb[0].mxu0
  %v195 = vadd.f32 %v93, %v194
  %196 = vmatprep.mubr.f32.mxu0 0.0
  %197 = vmatmul.mubr.f32.gmra.mrb[0].mxu0 %v106
  %v198 = vpop.f32.mrb[0].mxu0
  %v199 = vadd.f32 %v89, %v198
  %v200 = vpop.f32.mrb[0].mxu0
  %v201 = vadd.f32 %v93, %v200
  %202 = vmatprep.mubr.f32.mxu0 0.0
  %203 = vmatmul.mubr.f32.gmra.mrb[0].mxu0 %v109
  %v204 = vpop.f32.mrb[0].mxu0
  %v205 = vadd.f32 %v89, %v204
  %v206 = vpop.f32.mrb[0].mxu0
  %v207 = vadd.f32 %v93, %v206
  %208 = vmatprep.mubr.f32.mxu0 0.0
  %209 = vmatmul.mubr.f32.gmra.mrb[0].mxu0 %v112
  %v210 = vpop.f32.mrb[0].mxu0
  %v211 = vadd.f32 %v89, %v210
  %v212 = vpop.f32.mrb[0].mxu0
  %v213 = vadd.f32 %v93, %v212
  %214 = vmatprep.mubr.f32.mxu0 0.0
  %215 = vmatmul.mubr.f32.gmra.mrb[0].mxu0 %v115
  %v216 = vpop.f32.mrb[0].mxu0
  %v217 = vadd.f32 %v89, %v216
  %v218 = vpop.f32.mrb[0].mxu0
  %v219 = vadd.f32 %v93, %v218
  %220 = vmatprep.mubr.f32.mxu0 0.0
  %221 = vmatmul.mubr.f32.gmra.mrb[0].mxu0 %v118
  %v222 = vpop.f32.mrb[0].mxu0
  %v223 = vadd.f32 %v89, %v222
  %v224 = vpop.f32.mrb[0].mxu0
  %v225 = vadd.f32 %v93, %v224
  %226 = vmatprep.mubr.f32.mxu0 0.0
  %227 = vmatmul.mubr.f32.gmra.mrb[0].mxu0 %v121
  %v228 = vpop.f32.mrb[0].mxu0
  %v229 = vadd.f32 %v89, %v228
  %v230 = vpop.f32.mrb[0].mxu0
  %v231 = vadd.f32 %v93, %v230
  %232 = vmatprep.mubr.f32.mxu0 0.0
  %233 = vmatmul.mubr.f32.gmra.mrb[0].mxu0 %v124
  %v234 = vpop.f32.mrb[0].mxu0
  %v235 = vadd.f32 %v89, %v234
  %v236 = vpop.f32.mrb[0].mxu0
  %v237 = vadd.f32 %v93, %v236
  %238 = vdwg.mxu0
  %239 = vmatprep.subr.mxu0 0.0
  %240 = vmatpush1.msra.mxu0 %v44
  %241 = vmatprep.subr.mxu0 0.0
  %242 = vmatpush1.msra.mxu0 %v47
  %243 = vmatprep.subr.mxu0 0.0
  %244 = vmatpush1.msra.mxu0 %v50
  %245 = vmatprep.subr.mxu0 0.0
  %246 = vmatpush1.msra.mxu0 %v53
  %247 = vmatprep.subr.mxu0 0.0
  %248 = vmatpush1.msra.mxu0 %v56
  %249 = vmatprep.subr.mxu0 0.0
  %250 = vmatpush1.msra.mxu0 %v59
  %251 = vmatprep.subr.mxu0 0.0
  %252 = vmatpush1.msra.mxu0 %v62
  %253 = vmatprep.subr.mxu0 0.0
  %254 = vmatpush1.msra.mxu0 %v65
  %255 = vmatprep.subr.mxu0 0.0
  %256 = vmatpush1.msra.mxu0 %v68
  %257 = vmatprep.subr.mxu0 0.0
  %258 = vmatpush1.msra.mxu0 %v71
  %259 = vmatprep.subr.mxu0 0.0
  %260 = vmatpush1.msra.mxu0 %v74
  %261 = vmatprep.subr.mxu0 0.0
  %262 = vmatpush1.msra.mxu0 %v77
  %263 = vmatprep.subr.mxu0 0.0
  %264 = vmatpush1.msra.mxu0 %v80
  %265 = vmatprep.subr.mxu0 0.0
  %266 = vmatpush1.msra.mxu0 %v83
  %267 = vmatprep.subr.mxu0 0.0
  %268 = vmatpush1.msra.mxu0 0.0
  %269 = vmatprep.subr.mxu0 0.0
  %270 = vmatpush1.msra.mxu0 0.0
  %271 = vmatprep.subr.mxu0 0.0
  %272 = vmatpush1.msra.mxu0 0.0
  %273 = vmatprep.subr.mxu0 0.0
  %274 = vmatpush1.msra.mxu0 0.0
  %275 = vmatprep.subr.mxu0 0.0
  %276 = vmatpush1.msra.mxu0 0.0
  %277 = vmatprep.subr.mxu0 0.0
  %278 = vmatpush1.msra.mxu0 0.0
  %279 = vmatprep.subr.mxu0 0.0
  %280 = vmatpush1.msra.mxu0 0.0
  %281 = vmatprep.subr.mxu0 0.0
  %282 = vmatpush1.msra.mxu0 0.0
  %283 = vmatprep.subr.mxu0 0.0
  %284 = vmatpush1.msra.mxu0 0.0
  %285 = vmatprep.subr.mxu0 0.0
  %286 = vmatpush1.msra.mxu0 0.0
  %287 = vmatprep.subr.mxu0 0.0
  %288 = vmatpush1.msra.mxu0 0.0
  %289 = vmatprep.subr.mxu0 0.0
  %290 = vmatpush1.msra.mxu0 0.0
  %291 = vmatprep.subr.mxu0 0.0
  %292 = vmatpush1.msra.mxu0 0.0
  %293 = vmatprep.subr.mxu0 0.0
  %294 = vmatpush1.msra.mxu0 0.0
  %295 = vmatprep.subr.mxu0 0.0
  %296 = vmatpush1.msra.mxu0 0.0
  %297 = vmatprep.subr.mxu0 0.0
  %298 = vmatpush1.msra.mxu0 0.0
  %299 = vmatprep.subr.mxu0 0.0
  %300 = vmatpush1.msra.mxu0 0.0
  %301 = vmatprep.subr.mxu0 0.0
  %302 = vmatpush1.msra.mxu0 0.0
  %303 = vmatprep.mubr.f32.mxu0 0.0
  %304 = vmatmul.mubr.f32.gmra.mrb[0].mxu0 %v103
  %v305 = vpop.f32.mrb[0].mxu0
  %v306 = vadd.f32 %v97, %v305
  %v307 = vpop.f32.mrb[0].mxu0
  %308 = vmatprep.mubr.f32.mxu0 0.0
  %309 = vmatmul.mubr.f32.gmra.mrb[0].mxu0 %v106
  %v310 = vpop.f32.mrb[0].mxu0
  %v311 = vadd.f32 %v97, %v310
  %v312 = vpop.f32.mrb[0].mxu0
  %313 = vmatprep.mubr.f32.mxu0 0.0
  %314 = vmatmul.mubr.f32.gmra.mrb[0].mxu0 %v109
  %v315 = vpop.f32.mrb[0].mxu0
  %v316 = vadd.f32 %v97, %v315
  %v317 = vpop.f32.mrb[0].mxu0
  %318 = vmatprep.mubr.f32.mxu0 0.0
  %319 = vmatmul.mubr.f32.gmra.mrb[0].mxu0 %v112
  %v320 = vpop.f32.mrb[0].mxu0
  %v321 = vadd.f32 %v97, %v320
  %v322 = vpop.f32.mrb[0].mxu0
  %323 = vmatprep.mubr.f32.mxu0 0.0
  %324 = vmatmul.mubr.f32.gmra.mrb[0].mxu0 %v115
  %v325 = vpop.f32.mrb[0].mxu0
  %v326 = vadd.f32 %v97, %v325
  %v327 = vpop.f32.mrb[0].mxu0
  %328 = vmatprep.mubr.f32.mxu0 0.0
  %329 = vmatmul.mubr.f32.gmra.mrb[0].mxu0 %v118
  %v330 = vpop.f32.mrb[0].mxu0
  %v331 = vadd.f32 %v97, %v330
  %v332 = vpop.f32.mrb[0].mxu0
  %333 = vmatprep.mubr.f32.mxu0 0.0
  %334 = vmatmul.mubr.f32.gmra.mrb[0].mxu0 %v121
  %v335 = vpop.f32.mrb[0].mxu0
  %v336 = vadd.f32 %v97, %v335
  %v337 = vpop.f32.mrb[0].mxu0
  %338 = vmatprep.mubr.f32.mxu0 0.0
  %339 = vmatmul.mubr.f32.gmra.mrb[0].mxu0 %v124
  %v340 = vpop.f32.mrb[0].mxu0
  %v341 = vadd.f32 %v97, %v340
  %v342 = vpop.f32.mrb[0].mxu0
  %343 = vdwg.mxu0
  %v344 = vld [vmem:[%s3] sm:$0xf]
  %vm345 = vcmask 31744
  %v346 = vsel %vm345, %v306, -inf
  %347 = vmax.xlane.f32.xlu0 %v346
  %v348 = vpop.xlane.xlu0 %347
  %v349 = vsel %vm345, %v311, -inf
  %350 = vmax.xlane.f32.xlu0 %v349
  %v351 = vpop.xlane.xlu0 %350
  %v352 = vsel %vm345, %v316, -inf
  %353 = vmax.xlane.f32.xlu0 %v352
  %v354 = vpop.xlane.xlu0 %353
  %v355 = vsel %vm345, %v321, -inf
  %356 = vmax.xlane.f32.xlu0 %v355
  %v357 = vpop.xlane.xlu0 %356
  %v358 = vsel %vm345, %v326, -inf
  %359 = vmax.xlane.f32.xlu0 %v358
  %v360 = vpop.xlane.xlu0 %359
  %v361 = vsel %vm345, %v331, -inf
  %362 = vmax.xlane.f32.xlu0 %v361
  %v363 = vpop.xlane.xlu0 %362
  %v364 = vsel %vm345, %v336, -inf
  %365 = vmax.xlane.f32.xlu0 %v364
  %v366 = vpop.xlane.xlu0 %365
  %v367 = vsel %vm345, %v341, -inf
  %368 = vmax.xlane.f32.xlu0 %v367
  %v369 = vpop.xlane.xlu0 %368
  %v370 = vsub.f32 %v306, %v348
  %v371 = vsub.f32 %v311, %v351
  %v372 = vsub.f32 %v316, %v354
  %v373 = vsub.f32 %v321, %v357
  %v374 = vsub.f32 %v326, %v360
  %v375 = vsub.f32 %v331, %v363
  %v376 = vsub.f32 %v336, %v366
  %v377 = vsub.f32 %v341, %v369
  %v378 = vmul.f32 %v370, 1.442695
  %v379 = vpow.pop %v378
  %v380 = vmul.f32 %v371, 1.442695
  %v381 = vpow.pop %v380
  %v382 = vmul.f32 %v372, 1.442695
  %v383 = vpow.pop %v382
  %v384 = vmul.f32 %v373, 1.442695
  %v385 = vpow.pop %v384
  %v386 = vmul.f32 %v374, 1.442695
  %v387 = vpow.pop %v386
  %v388 = vmul.f32 %v375, 1.442695
  %v389 = vpow.pop %v388
  %v390 = vmul.f32 %v376, 1.442695
  %v391 = vpow.pop %v390
  %v392 = vmul.f32 %v377, 1.442695
  %v393 = vpow.pop %v392
  %v394 = vsel %vm345, %v379, 0.0
  %395 = vadd.xlane.f32.xlu0 %v394
  %v396 = vpop.xlane.xlu0 %395
  %v397 = vsel %vm345, %v381, 0.0
  %398 = vadd.xlane.f32.xlu0 %v397
  %v399 = vpop.xlane.xlu0 %398
  %v400 = vsel %vm345, %v383, 0.0
  %401 = vadd.xlane.f32.xlu0 %v400
  %v402 = vpop.xlane.xlu0 %401
  %v403 = vsel %vm345, %v385, 0.0
  %404 = vadd.xlane.f32.xlu0 %v403
  %v405 = vpop.xlane.xlu0 %404
  %v406 = vsel %vm345, %v387, 0.0
  %407 = vadd.xlane.f32.xlu0 %v406
  %v408 = vpop.xlane.xlu0 %407
  %v409 = vsel %vm345, %v389, 0.0
  %410 = vadd.xlane.f32.xlu0 %v409
  %v411 = vpop.xlane.xlu0 %410
  %v412 = vsel %vm345, %v391, 0.0
  %413 = vadd.xlane.f32.xlu0 %v412
  %v414 = vpop.xlane.xlu0 %413
  %v415 = vsel %vm345, %v393, 0.0
  %416 = vadd.xlane.f32.xlu0 %v415
  %v417 = vpop.xlane.xlu0 %416
  %v418 = vrcp.pop %v396
  %v419 = vrcp.pop %v399
  %v420 = vrcp.pop %v402
  %v421 = vrcp.pop %v405
  %v422 = vrcp.pop %v408
  %v423 = vrcp.pop %v411
  %v424 = vrcp.pop %v414
  %v425 = vrcp.pop %v417
  %v426 = vmul.f32 %v379, %v418
  %v427 = vmul.f32 %v381, %v419
  %v428 = vmul.f32 %v383, %v420
  %v429 = vmul.f32 %v385, %v421
  %v430 = vmul.f32 %v387, %v422
  %v431 = vmul.f32 %v389, %v423
  %v432 = vmul.f32 %v391, %v424
  %v433 = vmul.f32 %v393, %v425
  %v434 = vsel %vm345, %v426, 0.0
  %v435 = vsel %vm345, %v427, 0.0
  %v436 = vadd.f32 %v434, %v435
  %v437 = vsel %vm345, %v428, 0.0
  %v438 = vadd.f32 %v436, %v437
  %v439 = vsel %vm345, %v429, 0.0
  %v440 = vadd.f32 %v438, %v439
  %v441 = vsel %vm345, %v430, 0.0
  %v442 = vadd.f32 %v440, %v441
  %v443 = vsel %vm345, %v431, 0.0
  %v444 = vadd.f32 %v442, %v443
  %v445 = vsel %vm345, %v432, 0.0
  %v446 = vadd.f32 %v444, %v445
  %v447 = vsel %vm345, %v433, 0.0
  %v448 = vadd.f32 %v446, %v447
  %v449 = vrot.slane %v448, 4
  %v450 = vadd.f32 %v448, %v449
  %v451 = vrot.slane %v450, 2
  %v452 = vadd.f32 %v450, %v451
  %v453 = vrot.slane %v452, 1
  %v454 = vadd.f32 %v452, %v453
  %v455 = vlaneseq
  %v456 = vand.u32 %v455, 127
  %vm457 = vcmp.eq.f32.partialorder %v306, %v348
  %vm458 = vcmp.eq.f32.partialorder %v311, %v351
  %vm459 = vcmp.eq.f32.partialorder %v316, %v354
  %vm460 = vcmp.eq.f32.partialorder %v321, %v357
  %vm461 = vcmp.eq.f32.partialorder %v326, %v360
  %vm462 = vcmp.eq.f32.partialorder %v331, %v363
  %vm463 = vcmp.eq.f32.partialorder %v336, %v366
  %vm464 = vcmp.eq.f32.partialorder %v341, %v369
  %v465 = vsel %vm457, %v456, 4
  %v466 = vsel %vm458, %v456, 4
  %v467 = vsel %vm459, %v456, 4
  %v468 = vsel %vm460, %v456, 4
  %v469 = vsel %vm461, %v456, 4
  %v470 = vsel %vm462, %v456, 4
  %v471 = vsel %vm463, %v456, 4
  %v472 = vsel %vm464, %v456, 4
  %v473 = vsel %vm345, %v465, 2147483647
  %v474 = vand.u32 %v473, 65535
  %v475 = vshra.s32 %v473, 16
  %v476 = vcvt.s32.f32 %v474
  %v477 = vcvt.s32.f32 %v475
  %478 = vmin.xlane.f32.xlu0 %v477
  %v479 = vpop.xlane.xlu0 %478
  %vm480 = vcmp.eq.f32.partialorder %v477, %v479
  %v481 = vsel %vm480, %v476, inf
  %482 = vmin.xlane.f32.xlu0 %v481
  %v483 = vpop.xlane.xlu0 %482
  %v484 = vcvt.f32.s32 %v483
  %v485 = vcvt.f32.s32 %v479
  %v486 = vshll.u32 %v485, 16
  %v487 = vadd.s32 %v486, %v484
  %v488 = vsel %vm345, %v466, 2147483647
  %v489 = vand.u32 %v488, 65535
  %v490 = vshra.s32 %v488, 16
  %v491 = vcvt.s32.f32 %v489
  %v492 = vcvt.s32.f32 %v490
  %493 = vmin.xlane.f32.xlu0 %v492
  %v494 = vpop.xlane.xlu0 %493
  %vm495 = vcmp.eq.f32.partialorder %v492, %v494
  %v496 = vsel %vm495, %v491, inf
  %497 = vmin.xlane.f32.xlu0 %v496
  %v498 = vpop.xlane.xlu0 %497
  %v499 = vcvt.f32.s32 %v498
  %v500 = vcvt.f32.s32 %v494
  %v501 = vshll.u32 %v500, 16
  %v502 = vadd.s32 %v501, %v499
  %v503 = vsel %vm345, %v467, 2147483647
  %v504 = vand.u32 %v503, 65535
  %v505 = vshra.s32 %v503, 16
  %v506 = vcvt.s32.f32 %v504
  %v507 = vcvt.s32.f32 %v505
  %508 = vmin.xlane.f32.xlu0 %v507
  %v509 = vpop.xlane.xlu0 %508
  %vm510 = vcmp.eq.f32.partialorder %v507, %v509
  %v511 = vsel %vm510, %v506, inf
  %512 = vmin.xlane.f32.xlu0 %v511
  %v513 = vpop.xlane.xlu0 %512
  %v514 = vcvt.f32.s32 %v513
  %v515 = vcvt.f32.s32 %v509
  %v516 = vshll.u32 %v515, 16
  %v517 = vadd.s32 %v516, %v514
  %v518 = vsel %vm345, %v468, 2147483647
  %v519 = vand.u32 %v518, 65535
  %v520 = vshra.s32 %v518, 16
  %v521 = vcvt.s32.f32 %v519
  %v522 = vcvt.s32.f32 %v520
  %523 = vmin.xlane.f32.xlu0 %v522
  %v524 = vpop.xlane.xlu0 %523
  %vm525 = vcmp.eq.f32.partialorder %v522, %v524
  %v526 = vsel %vm525, %v521, inf
  %527 = vmin.xlane.f32.xlu0 %v526
  %v528 = vpop.xlane.xlu0 %527
  %v529 = vcvt.f32.s32 %v528
  %v530 = vcvt.f32.s32 %v524
  %v531 = vshll.u32 %v530, 16
  %v532 = vadd.s32 %v531, %v529
  %v533 = vsel %vm345, %v469, 2147483647
  %v534 = vand.u32 %v533, 65535
  %v535 = vshra.s32 %v533, 16
  %v536 = vcvt.s32.f32 %v534
  %v537 = vcvt.s32.f32 %v535
  %538 = vmin.xlane.f32.xlu0 %v537
  %v539 = vpop.xlane.xlu0 %538
  %vm540 = vcmp.eq.f32.partialorder %v537, %v539
  %v541 = vsel %vm540, %v536, inf
  %542 = vmin.xlane.f32.xlu0 %v541
  %v543 = vpop.xlane.xlu0 %542
  %v544 = vcvt.f32.s32 %v543
  %v545 = vcvt.f32.s32 %v539
  %v546 = vshll.u32 %v545, 16
  %v547 = vadd.s32 %v546, %v544
  %v548 = vsel %vm345, %v470, 2147483647
  %v549 = vand.u32 %v548, 65535
  %v550 = vshra.s32 %v548, 16
  %v551 = vcvt.s32.f32 %v549
  %v552 = vcvt.s32.f32 %v550
  %553 = vmin.xlane.f32.xlu0 %v552
  %v554 = vpop.xlane.xlu0 %553
  %vm555 = vcmp.eq.f32.partialorder %v552, %v554
  %v556 = vsel %vm555, %v551, inf
  %557 = vmin.xlane.f32.xlu0 %v556
  %v558 = vpop.xlane.xlu0 %557
  %v559 = vcvt.f32.s32 %v558
  %v560 = vcvt.f32.s32 %v554
  %v561 = vshll.u32 %v560, 16
  %v562 = vadd.s32 %v561, %v559
  %v563 = vsel %vm345, %v471, 2147483647
  %v564 = vand.u32 %v563, 65535
  %v565 = vshra.s32 %v563, 16
  %v566 = vcvt.s32.f32 %v564
  %v567 = vcvt.s32.f32 %v565
  %568 = vmin.xlane.f32.xlu0 %v567
  %v569 = vpop.xlane.xlu0 %568
  %vm570 = vcmp.eq.f32.partialorder %v567, %v569
  %v571 = vsel %vm570, %v566, inf
  %572 = vmin.xlane.f32.xlu0 %v571
  %v573 = vpop.xlane.xlu0 %572
  %v574 = vcvt.f32.s32 %v573
  %v575 = vcvt.f32.s32 %v569
  %v576 = vshll.u32 %v575, 16
  %v577 = vadd.s32 %v576, %v574
  %v578 = vsel %vm345, %v472, 2147483647
  %v579 = vand.u32 %v578, 65535
  %v580 = vshra.s32 %v578, 16
  %v581 = vcvt.s32.f32 %v579
  %v582 = vcvt.s32.f32 %v580
  %583 = vmin.xlane.f32.xlu0 %v582
  %v584 = vpop.xlane.xlu0 %583
  %vm585 = vcmp.eq.f32.partialorder %v582, %v584
  %v586 = vsel %vm585, %v581, inf
  %587 = vmin.xlane.f32.xlu0 %v586
  %v588 = vpop.xlane.xlu0 %587
  %v589 = vcvt.f32.s32 %v588
  %v590 = vcvt.f32.s32 %v584
  %v591 = vshll.u32 %v590, 16
  %v592 = vadd.s32 %v591, %v589
  %vm593 = vcmp.eq.s32.totalorder %v456, %v487
  %vm594 = vcmp.eq.s32.totalorder %v456, %v502
  %vm595 = vcmp.eq.s32.totalorder %v456, %v517
  %vm596 = vcmp.eq.s32.totalorder %v456, %v532
  %vm597 = vcmp.eq.s32.totalorder %v456, %v547
  %vm598 = vcmp.eq.s32.totalorder %v456, %v562
  %vm599 = vcmp.eq.s32.totalorder %v456, %v577
  %vm600 = vcmp.eq.s32.totalorder %v456, %v592
  %v601 = vsel %vm593, -1e+30, %v306
  %v602 = vsel %vm594, -1e+30, %v311
  %v603 = vsel %vm595, -1e+30, %v316
  %v604 = vsel %vm596, -1e+30, %v321
  %v605 = vsel %vm597, -1e+30, %v326
  %v606 = vsel %vm598, -1e+30, %v331
  %v607 = vsel %vm599, -1e+30, %v336
  %v608 = vsel %vm600, -1e+30, %v341
  %v609 = vsel %vm345, %v601, -inf
  %610 = vmax.xlane.f32.xlu0 %v609
  %v611 = vpop.xlane.xlu0 %610
  %v612 = vsel %vm345, %v602, -inf
  %613 = vmax.xlane.f32.xlu0 %v612
  %v614 = vpop.xlane.xlu0 %613
  %v615 = vsel %vm345, %v603, -inf
  %616 = vmax.xlane.f32.xlu0 %v615
  %v617 = vpop.xlane.xlu0 %616
  %v618 = vsel %vm345, %v604, -inf
  %619 = vmax.xlane.f32.xlu0 %v618
  %v620 = vpop.xlane.xlu0 %619
  %v621 = vsel %vm345, %v605, -inf
  %622 = vmax.xlane.f32.xlu0 %v621
  %v623 = vpop.xlane.xlu0 %622
  %v624 = vsel %vm345, %v606, -inf
  %625 = vmax.xlane.f32.xlu0 %v624
  %v626 = vpop.xlane.xlu0 %625
  %v627 = vsel %vm345, %v607, -inf
  %628 = vmax.xlane.f32.xlu0 %v627
  %v629 = vpop.xlane.xlu0 %628
  %v630 = vsel %vm345, %v608, -inf
  %631 = vmax.xlane.f32.xlu0 %v630
  %v632 = vpop.xlane.xlu0 %631
  %vm633 = vcmp.eq.f32.partialorder %v601, %v611
  %vm634 = vcmp.eq.f32.partialorder %v602, %v614
  %vm635 = vcmp.eq.f32.partialorder %v603, %v617
  %vm636 = vcmp.eq.f32.partialorder %v604, %v620
  %vm637 = vcmp.eq.f32.partialorder %v605, %v623
  %vm638 = vcmp.eq.f32.partialorder %v606, %v626
  %vm639 = vcmp.eq.f32.partialorder %v607, %v629
  %vm640 = vcmp.eq.f32.partialorder %v608, %v632
  %v641 = vsel %vm633, %v456, 4
  %v642 = vsel %vm634, %v456, 4
  %v643 = vsel %vm635, %v456, 4
  %v644 = vsel %vm636, %v456, 4
  %v645 = vsel %vm637, %v456, 4
  %v646 = vsel %vm638, %v456, 4
  %v647 = vsel %vm639, %v456, 4
  %v648 = vsel %vm640, %v456, 4
  %v649 = vsel %vm345, %v641, 2147483647
  %v650 = vand.u32 %v649, 65535
  %v651 = vshra.s32 %v649, 16
  %v652 = vcvt.s32.f32 %v650
  %v653 = vcvt.s32.f32 %v651
  %654 = vmin.xlane.f32.xlu0 %v653
  %v655 = vpop.xlane.xlu0 %654
  %vm656 = vcmp.eq.f32.partialorder %v653, %v655
  %v657 = vsel %vm656, %v652, inf
  %658 = vmin.xlane.f32.xlu0 %v657
  %v659 = vpop.xlane.xlu0 %658
  %v660 = vcvt.f32.s32 %v659
  %v661 = vcvt.f32.s32 %v655
  %v662 = vshll.u32 %v661, 16
  %v663 = vadd.s32 %v662, %v660
  %v664 = vsel %vm345, %v642, 2147483647
  %v665 = vand.u32 %v664, 65535
  %v666 = vshra.s32 %v664, 16
  %v667 = vcvt.s32.f32 %v665
  %v668 = vcvt.s32.f32 %v666
  %669 = vmin.xlane.f32.xlu0 %v668
  %v670 = vpop.xlane.xlu0 %669
  %vm671 = vcmp.eq.f32.partialorder %v668, %v670
  %v672 = vsel %vm671, %v667, inf
  %673 = vmin.xlane.f32.xlu0 %v672
  %v674 = vpop.xlane.xlu0 %673
  %v675 = vcvt.f32.s32 %v674
  %v676 = vcvt.f32.s32 %v670
  %v677 = vshll.u32 %v676, 16
  %v678 = vadd.s32 %v677, %v675
  %v679 = vsel %vm345, %v643, 2147483647
  %v680 = vand.u32 %v679, 65535
  %v681 = vshra.s32 %v679, 16
  %v682 = vcvt.s32.f32 %v680
  %v683 = vcvt.s32.f32 %v681
  %684 = vmin.xlane.f32.xlu0 %v683
  %v685 = vpop.xlane.xlu0 %684
  %vm686 = vcmp.eq.f32.partialorder %v683, %v685
  %v687 = vsel %vm686, %v682, inf
  %688 = vmin.xlane.f32.xlu0 %v687
  %v689 = vpop.xlane.xlu0 %688
  %v690 = vcvt.f32.s32 %v689
  %v691 = vcvt.f32.s32 %v685
  %v692 = vshll.u32 %v691, 16
  %v693 = vadd.s32 %v692, %v690
  %v694 = vsel %vm345, %v644, 2147483647
  %v695 = vand.u32 %v694, 65535
  %v696 = vshra.s32 %v694, 16
  %v697 = vcvt.s32.f32 %v695
  %v698 = vcvt.s32.f32 %v696
  %699 = vmin.xlane.f32.xlu0 %v698
  %v700 = vpop.xlane.xlu0 %699
  %vm701 = vcmp.eq.f32.partialorder %v698, %v700
  %v702 = vsel %vm701, %v697, inf
  %703 = vmin.xlane.f32.xlu0 %v702
  %v704 = vpop.xlane.xlu0 %703
  %v705 = vcvt.f32.s32 %v704
  %v706 = vcvt.f32.s32 %v700
  %v707 = vshll.u32 %v706, 16
  %v708 = vadd.s32 %v707, %v705
  %v709 = vsel %vm345, %v645, 2147483647
  %v710 = vand.u32 %v709, 65535
  %v711 = vshra.s32 %v709, 16
  %v712 = vcvt.s32.f32 %v710
  %v713 = vcvt.s32.f32 %v711
  %714 = vmin.xlane.f32.xlu0 %v713
  %v715 = vpop.xlane.xlu0 %714
  %vm716 = vcmp.eq.f32.partialorder %v713, %v715
  %v717 = vsel %vm716, %v712, inf
  %718 = vmin.xlane.f32.xlu0 %v717
  %v719 = vpop.xlane.xlu0 %718
  %v720 = vcvt.f32.s32 %v719
  %v721 = vcvt.f32.s32 %v715
  %v722 = vshll.u32 %v721, 16
  %v723 = vadd.s32 %v722, %v720
  %v724 = vsel %vm345, %v646, 2147483647
  %v725 = vand.u32 %v724, 65535
  %v726 = vshra.s32 %v724, 16
  %v727 = vcvt.s32.f32 %v725
  %v728 = vcvt.s32.f32 %v726
  %729 = vmin.xlane.f32.xlu0 %v728
  %v730 = vpop.xlane.xlu0 %729
  %vm731 = vcmp.eq.f32.partialorder %v728, %v730
  %v732 = vsel %vm731, %v727, inf
  %733 = vmin.xlane.f32.xlu0 %v732
  %v734 = vpop.xlane.xlu0 %733
  %v735 = vcvt.f32.s32 %v734
  %v736 = vcvt.f32.s32 %v730
  %v737 = vshll.u32 %v736, 16
  %v738 = vadd.s32 %v737, %v735
  %v739 = vsel %vm345, %v647, 2147483647
  %v740 = vand.u32 %v739, 65535
  %v741 = vshra.s32 %v739, 16
  %v742 = vcvt.s32.f32 %v740
  %v743 = vcvt.s32.f32 %v741
  %744 = vmin.xlane.f32.xlu0 %v743
  %v745 = vpop.xlane.xlu0 %744
  %vm746 = vcmp.eq.f32.partialorder %v743, %v745
  %v747 = vsel %vm746, %v742, inf
  %748 = vmin.xlane.f32.xlu0 %v747
  %v749 = vpop.xlane.xlu0 %748
  %v750 = vcvt.f32.s32 %v749
  %v751 = vcvt.f32.s32 %v745
  %v752 = vshll.u32 %v751, 16
  %v753 = vadd.s32 %v752, %v750
  %v754 = vsel %vm345, %v648, 2147483647
  %v755 = vand.u32 %v754, 65535
  %v756 = vshra.s32 %v754, 16
  %v757 = vcvt.s32.f32 %v755
  %v758 = vcvt.s32.f32 %v756
  %759 = vmin.xlane.f32.xlu0 %v758
  %v760 = vpop.xlane.xlu0 %759
  %vm761 = vcmp.eq.f32.partialorder %v758, %v760
  %v762 = vsel %vm761, %v757, inf
  %763 = vmin.xlane.f32.xlu0 %v762
  %v764 = vpop.xlane.xlu0 %763
  %v765 = vcvt.f32.s32 %v764
  %v766 = vcvt.f32.s32 %v760
  %v767 = vshll.u32 %v766, 16
  %v768 = vadd.s32 %v767, %v765
  %vm769 = vcmp.eq.s32.totalorder %v456, %v663
  %vm770 = vcmp.eq.s32.totalorder %v456, %v678
  %vm771 = vcmp.eq.s32.totalorder %v456, %v693
  %vm772 = vcmp.eq.s32.totalorder %v456, %v708
  %vm773 = vcmp.eq.s32.totalorder %v456, %v723
  %vm774 = vcmp.eq.s32.totalorder %v456, %v738
  %vm775 = vcmp.eq.s32.totalorder %v456, %v753
  %vm776 = vcmp.eq.s32.totalorder %v456, %v768
  %v777 = vsub.f32 %v611, %v348
  %v778 = vsub.f32 %v614, %v351
  %v779 = vsub.f32 %v617, %v354
  %v780 = vsub.f32 %v620, %v357
  %v781 = vsub.f32 %v623, %v360
  %v782 = vsub.f32 %v626, %v363
  %v783 = vsub.f32 %v629, %v366
  %v784 = vsub.f32 %v632, %v369
  %v785 = vmul.f32 %v777, 1.442695
  %v786 = vpow.pop %v785
  %v787 = vmul.f32 %v778, 1.442695
  %v788 = vpow.pop %v787
  %v789 = vmul.f32 %v779, 1.442695
  %v790 = vpow.pop %v789
  %v791 = vmul.f32 %v780, 1.442695
  %v792 = vpow.pop %v791
  %v793 = vmul.f32 %v781, 1.442695
  %v794 = vpow.pop %v793
  %v795 = vmul.f32 %v782, 1.442695
  %v796 = vpow.pop %v795
  %v797 = vmul.f32 %v783, 1.442695
  %v798 = vpow.pop %v797
  %v799 = vmul.f32 %v784, 1.442695
  %v800 = vpow.pop %v799
  %v801 = vadd.f32 %v786, 1.0
  %v802 = vadd.f32 %v788, 1.0
  %v803 = vadd.f32 %v790, 1.0
  %v804 = vadd.f32 %v792, 1.0
  %v805 = vadd.f32 %v794, 1.0
  %v806 = vadd.f32 %v796, 1.0
  %v807 = vadd.f32 %v798, 1.0
  %v808 = vadd.f32 %v800, 1.0
  %v809 = vrcp.pop %v801
  %v810 = vrcp.pop %v802
  %v811 = vrcp.pop %v803
  %v812 = vrcp.pop %v804
  %v813 = vrcp.pop %v805
  %v814 = vrcp.pop %v806
  %v815 = vrcp.pop %v807
  %v816 = vrcp.pop %v808
  %v817 = vsel %vm593, 1, 0
  %v818 = vsel %vm594, 1, 0
  %v819 = vsel %vm595, 1, 0
  %v820 = vsel %vm596, 1, 0
  %v821 = vsel %vm597, 1, 0
  %v822 = vsel %vm598, 1, 0
  %v823 = vsel %vm599, 1, 0
  %v824 = vsel %vm600, 1, 0
  %v825 = vcvt.s32.f32 %v817
  %v826 = vcvt.s32.f32 %v818
  %v827 = vcvt.s32.f32 %v819
  %v828 = vcvt.s32.f32 %v820
  %v829 = vcvt.s32.f32 %v821
  %v830 = vcvt.s32.f32 %v822
  %v831 = vcvt.s32.f32 %v823
  %v832 = vcvt.s32.f32 %v824
  %v833 = vmul.f32 %v809, %v825
  %v834 = vmul.f32 %v810, %v826
  %v835 = vmul.f32 %v811, %v827
  %v836 = vmul.f32 %v812, %v828
  %v837 = vmul.f32 %v813, %v829
  %v838 = vmul.f32 %v814, %v830
  %v839 = vmul.f32 %v815, %v831
  %v840 = vmul.f32 %v816, %v832
  %v841 = vmul.f32 %v786, %v809
  %v842 = vmul.f32 %v788, %v810
  %v843 = vmul.f32 %v790, %v811
  %v844 = vmul.f32 %v792, %v812
  %v845 = vmul.f32 %v794, %v813
  %v846 = vmul.f32 %v796, %v814
  %v847 = vmul.f32 %v798, %v815
  %v848 = vmul.f32 %v800, %v816
  %v849 = vsel %vm769, 1, 0
  %v850 = vsel %vm770, 1, 0
  %v851 = vsel %vm771, 1, 0
  %v852 = vsel %vm772, 1, 0
  %v853 = vsel %vm773, 1, 0
  %v854 = vsel %vm774, 1, 0
  %v855 = vsel %vm775, 1, 0
  %v856 = vsel %vm776, 1, 0
  %v857 = vcvt.s32.f32 %v849
  %v858 = vcvt.s32.f32 %v850
  %v859 = vcvt.s32.f32 %v851
  %v860 = vcvt.s32.f32 %v852
  %v861 = vcvt.s32.f32 %v853
  %v862 = vcvt.s32.f32 %v854
  %v863 = vcvt.s32.f32 %v855
  %v864 = vcvt.s32.f32 %v856
  %v865 = vmul.f32 %v841, %v857
  %v866 = vmul.f32 %v842, %v858
  %v867 = vmul.f32 %v843, %v859
  %v868 = vmul.f32 %v844, %v860
  %v869 = vmul.f32 %v845, %v861
  %v870 = vmul.f32 %v846, %v862
  %v871 = vmul.f32 %v847, %v863
  %v872 = vmul.f32 %v848, %v864
  %v873 = vadd.f32 %v833, %v865
  %v874 = vadd.f32 %v834, %v866
  %v875 = vadd.f32 %v835, %v867
  %v876 = vadd.f32 %v836, %v868
  %v877 = vadd.f32 %v837, %v869
  %v878 = vadd.f32 %v838, %v870
  %v879 = vadd.f32 %v839, %v871
  %v880 = vadd.f32 %v840, %v872
  %v882 = vsel %vm345, %v873, 0
  %v885 = vsel %vm345, %v874, 0
  %v888 = vsel %vm345, %v875, 0
  %v891 = vsel %vm345, %v876, 0
  %v894 = vsel %vm345, %v877, 0
  %v897 = vsel %vm345, %v878, 0
  %v900 = vsel %vm345, %v879, 0
  %v903 = vsel %vm345, %v880, 0
  %vm905 = vcmask 1043456
  %v907 = vsel %vm905, %v344, 0
  %909 = vmatprep.subr.mxu0 0.0
  %910 = vmatpush1.msra.mxu0 %v907
  %911 = vmatprep.subr.mxu0 0.0
  %912 = vmatpush1.msra.mxu0 0.0
  %913 = vmatprep.subr.mxu0 0.0
  %914 = vmatpush1.msra.mxu0 0.0
  %915 = vmatprep.subr.mxu0 0.0
  %916 = vmatpush1.msra.mxu0 0.0
  %917 = vmatprep.subr.mxu0 0.0
  %918 = vmatpush1.msra.mxu0 0.0
  %919 = vmatprep.subr.mxu0 0.0
  %920 = vmatpush1.msra.mxu0 0.0
  %921 = vmatprep.subr.mxu0 0.0
  %922 = vmatpush1.msra.mxu0 0.0
  %923 = vmatprep.subr.mxu0 0.0
  %924 = vmatpush1.msra.mxu0 0.0
  %925 = vmatprep.subr.mxu0 0.0
  %926 = vmatpush1.msra.mxu0 0.0
  %927 = vmatprep.subr.mxu0 0.0
  %928 = vmatpush1.msra.mxu0 0.0
  %929 = vmatprep.subr.mxu0 0.0
  %930 = vmatpush1.msra.mxu0 0.0
  %931 = vmatprep.subr.mxu0 0.0
  %932 = vmatpush1.msra.mxu0 0.0
  %933 = vmatprep.subr.mxu0 0.0
  %934 = vmatpush1.msra.mxu0 0.0
  %935 = vmatprep.subr.mxu0 0.0
  %936 = vmatpush1.msra.mxu0 0.0
  %937 = vmatprep.subr.mxu0 0.0
  %938 = vmatpush1.msra.mxu0 0.0
  %939 = vmatprep.subr.mxu0 0.0
  %940 = vmatpush1.msra.mxu0 0.0
  %941 = vmatprep.subr.mxu0 0.0
  %942 = vmatpush1.msra.mxu0 0.0
  %943 = vmatprep.subr.mxu0 0.0
  %944 = vmatpush1.msra.mxu0 0.0
  %945 = vmatprep.subr.mxu0 0.0
  %946 = vmatpush1.msra.mxu0 0.0
  %947 = vmatprep.subr.mxu0 0.0
  %948 = vmatpush1.msra.mxu0 0.0
  %949 = vmatprep.subr.mxu0 0.0
  %950 = vmatpush1.msra.mxu0 0.0
  %951 = vmatprep.subr.mxu0 0.0
  %952 = vmatpush1.msra.mxu0 0.0
  %953 = vmatprep.subr.mxu0 0.0
  %954 = vmatpush1.msra.mxu0 0.0
  %955 = vmatprep.subr.mxu0 0.0
  %956 = vmatpush1.msra.mxu0 0.0
  %957 = vmatprep.subr.mxu0 0.0
  %958 = vmatpush1.msra.mxu0 0.0
  %959 = vmatprep.subr.mxu0 0.0
  %960 = vmatpush1.msra.mxu0 0.0
  %961 = vmatprep.subr.mxu0 0.0
  %962 = vmatpush1.msra.mxu0 0.0
  %963 = vmatprep.subr.mxu0 0.0
  %964 = vmatpush1.msra.mxu0 0.0
  %965 = vmatprep.subr.mxu0 0.0
  %966 = vmatpush1.msra.mxu0 0.0
  %967 = vmatprep.subr.mxu0 0.0
  %968 = vmatpush1.msra.mxu0 0.0
  %969 = vmatprep.subr.mxu0 0.0
  %970 = vmatpush1.msra.mxu0 0.0
  %971 = vmatprep.subr.mxu0 0.0
  %972 = vmatpush1.msra.mxu0 0.0
  %973 = vmatprep.mubr.f32.mxu0 0.0
  %974 = vmatmul.mubr.f32.gmra.mrb[0].mxu0 %v882
  %v975 = vpop.f32.mrb[0].mxu0
  %v976 = vadd.f32 0.0, %v975
  %v977 = vpop.f32.mrb[0].mxu0
  %978 = vmatprep.mubr.f32.mxu0 0.0
  %979 = vmatmul.mubr.f32.gmra.mrb[0].mxu0 %v885
  %v980 = vpop.f32.mrb[0].mxu0
  %v981 = vadd.f32 0.0, %v980
  %v982 = vpop.f32.mrb[0].mxu0
  %983 = vmatprep.mubr.f32.mxu0 0.0
  %984 = vmatmul.mubr.f32.gmra.mrb[0].mxu0 %v888
  %v985 = vpop.f32.mrb[0].mxu0
  %v986 = vadd.f32 0.0, %v985
  %v987 = vpop.f32.mrb[0].mxu0
  %988 = vmatprep.mubr.f32.mxu0 0.0
  %989 = vmatmul.mubr.f32.gmra.mrb[0].mxu0 %v891
  %v990 = vpop.f32.mrb[0].mxu0
  %v991 = vadd.f32 0.0, %v990
  %v992 = vpop.f32.mrb[0].mxu0
  %993 = vmatprep.mubr.f32.mxu0 0.0
  %994 = vmatmul.mubr.f32.gmra.mrb[0].mxu0 %v894
  %v995 = vpop.f32.mrb[0].mxu0
  %v996 = vadd.f32 0.0, %v995
  %v997 = vpop.f32.mrb[0].mxu0
  %998 = vmatprep.mubr.f32.mxu0 0.0
  %999 = vmatmul.mubr.f32.gmra.mrb[0].mxu0 %v897
  %v1000 = vpop.f32.mrb[0].mxu0
  %v1001 = vadd.f32 0.0, %v1000
  %v1002 = vpop.f32.mrb[0].mxu0
  %1003 = vmatprep.mubr.f32.mxu0 0.0
  %1004 = vmatmul.mubr.f32.gmra.mrb[0].mxu0 %v900
  %v1005 = vpop.f32.mrb[0].mxu0
  %v1006 = vadd.f32 0.0, %v1005
  %v1007 = vpop.f32.mrb[0].mxu0
  %1008 = vmatprep.mubr.f32.mxu0 0.0
  %1009 = vmatmul.mubr.f32.gmra.mrb[0].mxu0 %v903
  %v1010 = vpop.f32.mrb[0].mxu0
  %v1011 = vadd.f32 0.0, %v1010
  %v1012 = vpop.f32.mrb[0].mxu0
  %1013 = vdwg.mxu0
  %v1014 = vmul.f32 %v193, %v976
  %v1015 = vmul.f32 %v199, %v981
  %v1016 = vmul.f32 %v205, %v986
  %v1017 = vmul.f32 %v211, %v991
  %v1018 = vmul.f32 %v217, %v996
  %v1019 = vmul.f32 %v223, %v1001
  %v1020 = vmul.f32 %v229, %v1006
  %v1021 = vmul.f32 %v235, %v1011
  %1022 = vrot.lane.b32.xlu0 %v1014, 64
  %v1023 = vpop.permute.xlu0 %1022
  %1024 = vrot.lane.b32.xlu0 %v1015, 64
  %v1025 = vpop.permute.xlu0 %1024
  %1026 = vrot.lane.b32.xlu0 %v1016, 64
  %v1027 = vpop.permute.xlu0 %1026
  %1028 = vrot.lane.b32.xlu0 %v1017, 64
  %v1029 = vpop.permute.xlu0 %1028
  %1030 = vrot.lane.b32.xlu0 %v1018, 64
  %v1031 = vpop.permute.xlu0 %1030
  %1032 = vrot.lane.b32.xlu0 %v1019, 64
  %v1033 = vpop.permute.xlu0 %1032
  %1034 = vrot.lane.b32.xlu0 %v1020, 64
  %v1035 = vpop.permute.xlu0 %1034
  %1036 = vrot.lane.b32.xlu0 %v1021, 64
  %v1037 = vpop.permute.xlu0 %1036
  %v1038 = vadd.f32 %v1014, %v1023
  %v1039 = vadd.f32 %v1015, %v1025
  %v1040 = vadd.f32 %v1016, %v1027
  %v1041 = vadd.f32 %v1017, %v1029
  %v1042 = vadd.f32 %v1018, %v1031
  %v1043 = vadd.f32 %v1019, %v1033
  %v1044 = vadd.f32 %v1020, %v1035
  %v1045 = vadd.f32 %v1021, %v1037
  %1046 = vrot.lane.b32.xlu0 %v1038, 96
  %v1047 = vpop.permute.xlu0 %1046
  %1048 = vrot.lane.b32.xlu0 %v1039, 96
  %v1049 = vpop.permute.xlu0 %1048
  %1050 = vrot.lane.b32.xlu0 %v1040, 96
  %v1051 = vpop.permute.xlu0 %1050
  %1052 = vrot.lane.b32.xlu0 %v1041, 96
  %v1053 = vpop.permute.xlu0 %1052
  %1054 = vrot.lane.b32.xlu0 %v1042, 96
  %v1055 = vpop.permute.xlu0 %1054
  %1056 = vrot.lane.b32.xlu0 %v1043, 96
  %v1057 = vpop.permute.xlu0 %1056
  %1058 = vrot.lane.b32.xlu0 %v1044, 96
  %v1059 = vpop.permute.xlu0 %1058
  %1060 = vrot.lane.b32.xlu0 %v1045, 96
  %v1061 = vpop.permute.xlu0 %1060
  %v1062 = vadd.f32 %v1038, %v1047
  %v1063 = vadd.f32 %v1039, %v1049
  %v1064 = vadd.f32 %v1040, %v1051
  %v1065 = vadd.f32 %v1041, %v1053
  %v1066 = vadd.f32 %v1042, %v1055
  %v1067 = vadd.f32 %v1043, %v1057
  %v1068 = vadd.f32 %v1044, %v1059
  %v1069 = vadd.f32 %v1045, %v1061
  %vm1070 = vcmask 64544
  %v1071 = vsel %vm1070, %v306, -inf
  %1072 = vmax.xlane.f32.xlu0 %v1071
  %v1073 = vpop.xlane.xlu0 %1072
  %v1074 = vsel %vm1070, %v311, -inf
  %1075 = vmax.xlane.f32.xlu0 %v1074
  %v1076 = vpop.xlane.xlu0 %1075
  %v1077 = vsel %vm1070, %v316, -inf
  %1078 = vmax.xlane.f32.xlu0 %v1077
  %v1079 = vpop.xlane.xlu0 %1078
  %v1080 = vsel %vm1070, %v321, -inf
  %1081 = vmax.xlane.f32.xlu0 %v1080
  %v1082 = vpop.xlane.xlu0 %1081
  %v1083 = vsel %vm1070, %v326, -inf
  %1084 = vmax.xlane.f32.xlu0 %v1083
  %v1085 = vpop.xlane.xlu0 %1084
  %v1086 = vsel %vm1070, %v331, -inf
  %1087 = vmax.xlane.f32.xlu0 %v1086
  %v1088 = vpop.xlane.xlu0 %1087
  %v1089 = vsel %vm1070, %v336, -inf
  %1090 = vmax.xlane.f32.xlu0 %v1089
  %v1091 = vpop.xlane.xlu0 %1090
  %v1092 = vsel %vm1070, %v341, -inf
  %1093 = vmax.xlane.f32.xlu0 %v1092
  %v1094 = vpop.xlane.xlu0 %1093
  %v1095 = vsub.f32 %v306, %v1073
  %v1096 = vsub.f32 %v311, %v1076
  %v1097 = vsub.f32 %v316, %v1079
  %v1098 = vsub.f32 %v321, %v1082
  %v1099 = vsub.f32 %v326, %v1085
  %v1100 = vsub.f32 %v331, %v1088
  %v1101 = vsub.f32 %v336, %v1091
  %v1102 = vsub.f32 %v341, %v1094
  %v1103 = vmul.f32 %v1095, 1.442695
  %v1104 = vpow.pop %v1103
  %v1105 = vmul.f32 %v1096, 1.442695
  %v1106 = vpow.pop %v1105
  %v1107 = vmul.f32 %v1097, 1.442695
  %v1108 = vpow.pop %v1107
  %v1109 = vmul.f32 %v1098, 1.442695
  %v1110 = vpow.pop %v1109
  %v1111 = vmul.f32 %v1099, 1.442695
  %v1112 = vpow.pop %v1111
  %v1113 = vmul.f32 %v1100, 1.442695
  %v1114 = vpow.pop %v1113
  %v1115 = vmul.f32 %v1101, 1.442695
  %v1116 = vpow.pop %v1115
  %v1117 = vmul.f32 %v1102, 1.442695
  %v1118 = vpow.pop %v1117
  %1127 = vrot.lane.b32.xlu0 %v1104, 124
  %v1128 = vpop.permute.xlu0 %1127
  %1129 = vrot.lane.b32.xlu0 %v1106, 124
  %v1130 = vpop.permute.xlu0 %1129
  %1131 = vrot.lane.b32.xlu0 %v1108, 124
  %v1132 = vpop.permute.xlu0 %1131
  %1133 = vrot.lane.b32.xlu0 %v1110, 124
  %v1134 = vpop.permute.xlu0 %1133
  %1135 = vrot.lane.b32.xlu0 %v1112, 124
  %v1136 = vpop.permute.xlu0 %1135
  %1137 = vrot.lane.b32.xlu0 %v1114, 124
  %v1138 = vpop.permute.xlu0 %1137
  %1139 = vrot.lane.b32.xlu0 %v1116, 124
  %v1140 = vpop.permute.xlu0 %1139
  %1141 = vrot.lane.b32.xlu0 %v1118, 124
  %v1142 = vpop.permute.xlu0 %1141
  %v1151 = vsel %vm345, %v1128, 0.0
  %1152 = vadd.xlane.f32.xlu0 %v1151
  %v1153 = vpop.xlane.xlu0 %1152
  %v1154 = vsel %vm345, %v1130, 0.0
  %1155 = vadd.xlane.f32.xlu0 %v1154
  %v1156 = vpop.xlane.xlu0 %1155
  %v1157 = vsel %vm345, %v1132, 0.0
  %1158 = vadd.xlane.f32.xlu0 %v1157
  %v1159 = vpop.xlane.xlu0 %1158
  %v1160 = vsel %vm345, %v1134, 0.0
  %1161 = vadd.xlane.f32.xlu0 %v1160
  %v1162 = vpop.xlane.xlu0 %1161
  %v1163 = vsel %vm345, %v1136, 0.0
  %1164 = vadd.xlane.f32.xlu0 %v1163
  %v1165 = vpop.xlane.xlu0 %1164
  %v1166 = vsel %vm345, %v1138, 0.0
  %1167 = vadd.xlane.f32.xlu0 %v1166
  %v1168 = vpop.xlane.xlu0 %1167
  %v1169 = vsel %vm345, %v1140, 0.0
  %1170 = vadd.xlane.f32.xlu0 %v1169
  %v1171 = vpop.xlane.xlu0 %1170
  %v1172 = vsel %vm345, %v1142, 0.0
  %1173 = vadd.xlane.f32.xlu0 %v1172
  %v1174 = vpop.xlane.xlu0 %1173
  %v1175 = vrcp.pop %v1153
  %v1176 = vrcp.pop %v1156
  %v1177 = vrcp.pop %v1159
  %v1178 = vrcp.pop %v1162
  %v1179 = vrcp.pop %v1165
  %v1180 = vrcp.pop %v1168
  %v1181 = vrcp.pop %v1171
  %v1182 = vrcp.pop %v1174
  %v1183 = vmul.f32 %v1104, %v1175
  %v1184 = vmul.f32 %v1106, %v1176
  %v1185 = vmul.f32 %v1108, %v1177
  %v1186 = vmul.f32 %v1110, %v1178
  %v1187 = vmul.f32 %v1112, %v1179
  %v1188 = vmul.f32 %v1114, %v1180
  %v1189 = vmul.f32 %v1116, %v1181
  %v1190 = vmul.f32 %v1118, %v1182
  %v1191 = vsel %vm1070, %v1183, 0.0
  %v1192 = vsel %vm1070, %v1184, 0.0
  %v1193 = vadd.f32 %v1191, %v1192
  %v1194 = vsel %vm1070, %v1185, 0.0
  %v1195 = vadd.f32 %v1193, %v1194
  %v1196 = vsel %vm1070, %v1186, 0.0
  %v1197 = vadd.f32 %v1195, %v1196
  %v1198 = vsel %vm1070, %v1187, 0.0
  %v1199 = vadd.f32 %v1197, %v1198
  %v1200 = vsel %vm1070, %v1188, 0.0
  %v1201 = vadd.f32 %v1199, %v1200
  %v1202 = vsel %vm1070, %v1189, 0.0
  %v1203 = vadd.f32 %v1201, %v1202
  %v1204 = vsel %vm1070, %v1190, 0.0
  %v1205 = vadd.f32 %v1203, %v1204
  %v1206 = vrot.slane %v1205, 4
  %v1207 = vadd.f32 %v1205, %v1206
  %v1208 = vrot.slane %v1207, 2
  %v1209 = vadd.f32 %v1207, %v1208
  %v1210 = vrot.slane %v1209, 1
  %v1211 = vadd.f32 %v1209, %v1210
  %vm1212 = vcmp.eq.f32.partialorder %v306, %v1073
  %vm1213 = vcmp.eq.f32.partialorder %v311, %v1076
  %vm1214 = vcmp.eq.f32.partialorder %v316, %v1079
  %vm1215 = vcmp.eq.f32.partialorder %v321, %v1082
  %vm1216 = vcmp.eq.f32.partialorder %v326, %v1085
  %vm1217 = vcmp.eq.f32.partialorder %v331, %v1088
  %vm1218 = vcmp.eq.f32.partialorder %v336, %v1091
  %vm1219 = vcmp.eq.f32.partialorder %v341, %v1094
  %1220 = vrot.lane.b32.xlu0 %v456, 4
  %v1221 = vpop.permute.xlu0 %1220
  %v1222 = vsel %vm1212, %v1221, 4
  %v1223 = vsel %vm1213, %v1221, 4
  %v1224 = vsel %vm1214, %v1221, 4
  %v1225 = vsel %vm1215, %v1221, 4
  %v1226 = vsel %vm1216, %v1221, 4
  %v1227 = vsel %vm1217, %v1221, 4
  %v1228 = vsel %vm1218, %v1221, 4
  %v1229 = vsel %vm1219, %v1221, 4
  %v1230 = vsel %vm1070, %v1222, 2147483647
  %v1231 = vand.u32 %v1230, 65535
  %v1232 = vshra.s32 %v1230, 16
  %v1233 = vcvt.s32.f32 %v1231
  %v1234 = vcvt.s32.f32 %v1232
  %1235 = vmin.xlane.f32.xlu0 %v1234
  %v1236 = vpop.xlane.xlu0 %1235
  %vm1237 = vcmp.eq.f32.partialorder %v1234, %v1236
  %v1238 = vsel %vm1237, %v1233, inf
  %1239 = vmin.xlane.f32.xlu0 %v1238
  %v1240 = vpop.xlane.xlu0 %1239
  %v1241 = vcvt.f32.s32 %v1240
  %v1242 = vcvt.f32.s32 %v1236
  %v1243 = vshll.u32 %v1242, 16
  %v1244 = vadd.s32 %v1243, %v1241
  %v1245 = vsel %vm1070, %v1223, 2147483647
  %v1246 = vand.u32 %v1245, 65535
  %v1247 = vshra.s32 %v1245, 16
  %v1248 = vcvt.s32.f32 %v1246
  %v1249 = vcvt.s32.f32 %v1247
  %1250 = vmin.xlane.f32.xlu0 %v1249
  %v1251 = vpop.xlane.xlu0 %1250
  %vm1252 = vcmp.eq.f32.partialorder %v1249, %v1251
  %v1253 = vsel %vm1252, %v1248, inf
  %1254 = vmin.xlane.f32.xlu0 %v1253
  %v1255 = vpop.xlane.xlu0 %1254
  %v1256 = vcvt.f32.s32 %v1255
  %v1257 = vcvt.f32.s32 %v1251
  %v1258 = vshll.u32 %v1257, 16
  %v1259 = vadd.s32 %v1258, %v1256
  %v1260 = vsel %vm1070, %v1224, 2147483647
  %v1261 = vand.u32 %v1260, 65535
  %v1262 = vshra.s32 %v1260, 16
  %v1263 = vcvt.s32.f32 %v1261
  %v1264 = vcvt.s32.f32 %v1262
  %1265 = vmin.xlane.f32.xlu0 %v1264
  %v1266 = vpop.xlane.xlu0 %1265
  %vm1267 = vcmp.eq.f32.partialorder %v1264, %v1266
  %v1268 = vsel %vm1267, %v1263, inf
  %1269 = vmin.xlane.f32.xlu0 %v1268
  %v1270 = vpop.xlane.xlu0 %1269
  %v1271 = vcvt.f32.s32 %v1270
  %v1272 = vcvt.f32.s32 %v1266
  %v1273 = vshll.u32 %v1272, 16
  %v1274 = vadd.s32 %v1273, %v1271
  %v1275 = vsel %vm1070, %v1225, 2147483647
  %v1276 = vand.u32 %v1275, 65535
  %v1277 = vshra.s32 %v1275, 16
  %v1278 = vcvt.s32.f32 %v1276
  %v1279 = vcvt.s32.f32 %v1277
  %1280 = vmin.xlane.f32.xlu0 %v1279
  %v1281 = vpop.xlane.xlu0 %1280
  %vm1282 = vcmp.eq.f32.partialorder %v1279, %v1281
  %v1283 = vsel %vm1282, %v1278, inf
  %1284 = vmin.xlane.f32.xlu0 %v1283
  %v1285 = vpop.xlane.xlu0 %1284
  %v1286 = vcvt.f32.s32 %v1285
  %v1287 = vcvt.f32.s32 %v1281
  %v1288 = vshll.u32 %v1287, 16
  %v1289 = vadd.s32 %v1288, %v1286
  %v1290 = vsel %vm1070, %v1226, 2147483647
  %v1291 = vand.u32 %v1290, 65535
  %v1292 = vshra.s32 %v1290, 16
  %v1293 = vcvt.s32.f32 %v1291
  %v1294 = vcvt.s32.f32 %v1292
  %1295 = vmin.xlane.f32.xlu0 %v1294
  %v1296 = vpop.xlane.xlu0 %1295
  %vm1297 = vcmp.eq.f32.partialorder %v1294, %v1296
  %v1298 = vsel %vm1297, %v1293, inf
  %1299 = vmin.xlane.f32.xlu0 %v1298
  %v1300 = vpop.xlane.xlu0 %1299
  %v1301 = vcvt.f32.s32 %v1300
  %v1302 = vcvt.f32.s32 %v1296
  %v1303 = vshll.u32 %v1302, 16
  %v1304 = vadd.s32 %v1303, %v1301
  %v1305 = vsel %vm1070, %v1227, 2147483647
  %v1306 = vand.u32 %v1305, 65535
  %v1307 = vshra.s32 %v1305, 16
  %v1308 = vcvt.s32.f32 %v1306
  %v1309 = vcvt.s32.f32 %v1307
  %1310 = vmin.xlane.f32.xlu0 %v1309
  %v1311 = vpop.xlane.xlu0 %1310
  %vm1312 = vcmp.eq.f32.partialorder %v1309, %v1311
  %v1313 = vsel %vm1312, %v1308, inf
  %1314 = vmin.xlane.f32.xlu0 %v1313
  %v1315 = vpop.xlane.xlu0 %1314
  %v1316 = vcvt.f32.s32 %v1315
  %v1317 = vcvt.f32.s32 %v1311
  %v1318 = vshll.u32 %v1317, 16
  %v1319 = vadd.s32 %v1318, %v1316
  %v1320 = vsel %vm1070, %v1228, 2147483647
  %v1321 = vand.u32 %v1320, 65535
  %v1322 = vshra.s32 %v1320, 16
  %v1323 = vcvt.s32.f32 %v1321
  %v1324 = vcvt.s32.f32 %v1322
  %1325 = vmin.xlane.f32.xlu0 %v1324
  %v1326 = vpop.xlane.xlu0 %1325
  %vm1327 = vcmp.eq.f32.partialorder %v1324, %v1326
  %v1328 = vsel %vm1327, %v1323, inf
  %1329 = vmin.xlane.f32.xlu0 %v1328
  %v1330 = vpop.xlane.xlu0 %1329
  %v1331 = vcvt.f32.s32 %v1330
  %v1332 = vcvt.f32.s32 %v1326
  %v1333 = vshll.u32 %v1332, 16
  %v1334 = vadd.s32 %v1333, %v1331
  %v1335 = vsel %vm1070, %v1229, 2147483647
  %v1336 = vand.u32 %v1335, 65535
  %v1337 = vshra.s32 %v1335, 16
  %v1338 = vcvt.s32.f32 %v1336
  %v1339 = vcvt.s32.f32 %v1337
  %1340 = vmin.xlane.f32.xlu0 %v1339
  %v1341 = vpop.xlane.xlu0 %1340
  %vm1342 = vcmp.eq.f32.partialorder %v1339, %v1341
  %v1343 = vsel %vm1342, %v1338, inf
  %1344 = vmin.xlane.f32.xlu0 %v1343
  %v1345 = vpop.xlane.xlu0 %1344
  %v1346 = vcvt.f32.s32 %v1345
  %v1347 = vcvt.f32.s32 %v1341
  %v1348 = vshll.u32 %v1347, 16
  %v1349 = vadd.s32 %v1348, %v1346
  %vm1350 = vcmp.eq.s32.totalorder %v456, %v1244
  %vm1351 = vcmp.eq.s32.totalorder %v456, %v1259
  %vm1352 = vcmp.eq.s32.totalorder %v456, %v1274
  %vm1353 = vcmp.eq.s32.totalorder %v456, %v1289
  %vm1354 = vcmp.eq.s32.totalorder %v456, %v1304
  %vm1355 = vcmp.eq.s32.totalorder %v456, %v1319
  %vm1356 = vcmp.eq.s32.totalorder %v456, %v1334
  %vm1357 = vcmp.eq.s32.totalorder %v456, %v1349
  %1366 = vrot.lane.b32.xlu0 %v306, 124
  %v1367 = vpop.permute.xlu0 %1366
  %1368 = vrot.lane.b32.xlu0 %v311, 124
  %v1369 = vpop.permute.xlu0 %1368
  %1370 = vrot.lane.b32.xlu0 %v316, 124
  %v1371 = vpop.permute.xlu0 %1370
  %1372 = vrot.lane.b32.xlu0 %v321, 124
  %v1373 = vpop.permute.xlu0 %1372
  %1374 = vrot.lane.b32.xlu0 %v326, 124
  %v1375 = vpop.permute.xlu0 %1374
  %1376 = vrot.lane.b32.xlu0 %v331, 124
  %v1377 = vpop.permute.xlu0 %1376
  %1378 = vrot.lane.b32.xlu0 %v336, 124
  %v1379 = vpop.permute.xlu0 %1378
  %1380 = vrot.lane.b32.xlu0 %v341, 124
  %v1381 = vpop.permute.xlu0 %1380
  %v1390 = vsel %vm1350, -1e+30, %v1367
  %v1391 = vsel %vm1351, -1e+30, %v1369
  %v1392 = vsel %vm1352, -1e+30, %v1371
  %v1393 = vsel %vm1353, -1e+30, %v1373
  %v1394 = vsel %vm1354, -1e+30, %v1375
  %v1395 = vsel %vm1355, -1e+30, %v1377
  %v1396 = vsel %vm1356, -1e+30, %v1379
  %v1397 = vsel %vm1357, -1e+30, %v1381
  %v1398 = vsel %vm345, %v1390, -inf
  %1399 = vmax.xlane.f32.xlu0 %v1398
  %v1400 = vpop.xlane.xlu0 %1399
  %v1401 = vsel %vm345, %v1391, -inf
  %1402 = vmax.xlane.f32.xlu0 %v1401
  %v1403 = vpop.xlane.xlu0 %1402
  %v1404 = vsel %vm345, %v1392, -inf
  %1405 = vmax.xlane.f32.xlu0 %v1404
  %v1406 = vpop.xlane.xlu0 %1405
  %v1407 = vsel %vm345, %v1393, -inf
  %1408 = vmax.xlane.f32.xlu0 %v1407
  %v1409 = vpop.xlane.xlu0 %1408
  %v1410 = vsel %vm345, %v1394, -inf
  %1411 = vmax.xlane.f32.xlu0 %v1410
  %v1412 = vpop.xlane.xlu0 %1411
  %v1413 = vsel %vm345, %v1395, -inf
  %1414 = vmax.xlane.f32.xlu0 %v1413
  %v1415 = vpop.xlane.xlu0 %1414
  %v1416 = vsel %vm345, %v1396, -inf
  %1417 = vmax.xlane.f32.xlu0 %v1416
  %v1418 = vpop.xlane.xlu0 %1417
  %v1419 = vsel %vm345, %v1397, -inf
  %1420 = vmax.xlane.f32.xlu0 %v1419
  %v1421 = vpop.xlane.xlu0 %1420
  %vm1422 = vcmp.eq.f32.partialorder %v1390, %v1400
  %vm1423 = vcmp.eq.f32.partialorder %v1391, %v1403
  %vm1424 = vcmp.eq.f32.partialorder %v1392, %v1406
  %vm1425 = vcmp.eq.f32.partialorder %v1393, %v1409
  %vm1426 = vcmp.eq.f32.partialorder %v1394, %v1412
  %vm1427 = vcmp.eq.f32.partialorder %v1395, %v1415
  %vm1428 = vcmp.eq.f32.partialorder %v1396, %v1418
  %vm1429 = vcmp.eq.f32.partialorder %v1397, %v1421
  %v1430 = vsel %vm1422, %v456, 4
  %v1431 = vsel %vm1423, %v456, 4
  %v1432 = vsel %vm1424, %v456, 4
  %v1433 = vsel %vm1425, %v456, 4
  %v1434 = vsel %vm1426, %v456, 4
  %v1435 = vsel %vm1427, %v456, 4
  %v1436 = vsel %vm1428, %v456, 4
  %v1437 = vsel %vm1429, %v456, 4
  %v1438 = vsel %vm345, %v1430, 2147483647
  %v1439 = vand.u32 %v1438, 65535
  %v1440 = vshra.s32 %v1438, 16
  %v1441 = vcvt.s32.f32 %v1439
  %v1442 = vcvt.s32.f32 %v1440
  %1443 = vmin.xlane.f32.xlu0 %v1442
  %v1444 = vpop.xlane.xlu0 %1443
  %vm1445 = vcmp.eq.f32.partialorder %v1442, %v1444
  %v1446 = vsel %vm1445, %v1441, inf
  %1447 = vmin.xlane.f32.xlu0 %v1446
  %v1448 = vpop.xlane.xlu0 %1447
  %v1449 = vcvt.f32.s32 %v1448
  %v1450 = vcvt.f32.s32 %v1444
  %v1451 = vshll.u32 %v1450, 16
  %v1452 = vadd.s32 %v1451, %v1449
  %v1453 = vsel %vm345, %v1431, 2147483647
  %v1454 = vand.u32 %v1453, 65535
  %v1455 = vshra.s32 %v1453, 16
  %v1456 = vcvt.s32.f32 %v1454
  %v1457 = vcvt.s32.f32 %v1455
  %1458 = vmin.xlane.f32.xlu0 %v1457
  %v1459 = vpop.xlane.xlu0 %1458
  %vm1460 = vcmp.eq.f32.partialorder %v1457, %v1459
  %v1461 = vsel %vm1460, %v1456, inf
  %1462 = vmin.xlane.f32.xlu0 %v1461
  %v1463 = vpop.xlane.xlu0 %1462
  %v1464 = vcvt.f32.s32 %v1463
  %v1465 = vcvt.f32.s32 %v1459
  %v1466 = vshll.u32 %v1465, 16
  %v1467 = vadd.s32 %v1466, %v1464
  %v1468 = vsel %vm345, %v1432, 2147483647
  %v1469 = vand.u32 %v1468, 65535
  %v1470 = vshra.s32 %v1468, 16
  %v1471 = vcvt.s32.f32 %v1469
  %v1472 = vcvt.s32.f32 %v1470
  %1473 = vmin.xlane.f32.xlu0 %v1472
  %v1474 = vpop.xlane.xlu0 %1473
  %vm1475 = vcmp.eq.f32.partialorder %v1472, %v1474
  %v1476 = vsel %vm1475, %v1471, inf
  %1477 = vmin.xlane.f32.xlu0 %v1476
  %v1478 = vpop.xlane.xlu0 %1477
  %v1479 = vcvt.f32.s32 %v1478
  %v1480 = vcvt.f32.s32 %v1474
  %v1481 = vshll.u32 %v1480, 16
  %v1482 = vadd.s32 %v1481, %v1479
  %v1483 = vsel %vm345, %v1433, 2147483647
  %v1484 = vand.u32 %v1483, 65535
  %v1485 = vshra.s32 %v1483, 16
  %v1486 = vcvt.s32.f32 %v1484
  %v1487 = vcvt.s32.f32 %v1485
  %1488 = vmin.xlane.f32.xlu0 %v1487
  %v1489 = vpop.xlane.xlu0 %1488
  %vm1490 = vcmp.eq.f32.partialorder %v1487, %v1489
  %v1491 = vsel %vm1490, %v1486, inf
  %1492 = vmin.xlane.f32.xlu0 %v1491
  %v1493 = vpop.xlane.xlu0 %1492
  %v1494 = vcvt.f32.s32 %v1493
  %v1495 = vcvt.f32.s32 %v1489
  %v1496 = vshll.u32 %v1495, 16
  %v1497 = vadd.s32 %v1496, %v1494
  %v1498 = vsel %vm345, %v1434, 2147483647
  %v1499 = vand.u32 %v1498, 65535
  %v1500 = vshra.s32 %v1498, 16
  %v1501 = vcvt.s32.f32 %v1499
  %v1502 = vcvt.s32.f32 %v1500
  %1503 = vmin.xlane.f32.xlu0 %v1502
  %v1504 = vpop.xlane.xlu0 %1503
  %vm1505 = vcmp.eq.f32.partialorder %v1502, %v1504
  %v1506 = vsel %vm1505, %v1501, inf
  %1507 = vmin.xlane.f32.xlu0 %v1506
  %v1508 = vpop.xlane.xlu0 %1507
  %v1509 = vcvt.f32.s32 %v1508
  %v1510 = vcvt.f32.s32 %v1504
  %v1511 = vshll.u32 %v1510, 16
  %v1512 = vadd.s32 %v1511, %v1509
  %v1513 = vsel %vm345, %v1435, 2147483647
  %v1514 = vand.u32 %v1513, 65535
  %v1515 = vshra.s32 %v1513, 16
  %v1516 = vcvt.s32.f32 %v1514
  %v1517 = vcvt.s32.f32 %v1515
  %1518 = vmin.xlane.f32.xlu0 %v1517
  %v1519 = vpop.xlane.xlu0 %1518
  %vm1520 = vcmp.eq.f32.partialorder %v1517, %v1519
  %v1521 = vsel %vm1520, %v1516, inf
  %1522 = vmin.xlane.f32.xlu0 %v1521
  %v1523 = vpop.xlane.xlu0 %1522
  %v1524 = vcvt.f32.s32 %v1523
  %v1525 = vcvt.f32.s32 %v1519
  %v1526 = vshll.u32 %v1525, 16
  %v1527 = vadd.s32 %v1526, %v1524
  %v1528 = vsel %vm345, %v1436, 2147483647
  %v1529 = vand.u32 %v1528, 65535
  %v1530 = vshra.s32 %v1528, 16
  %v1531 = vcvt.s32.f32 %v1529
  %v1532 = vcvt.s32.f32 %v1530
  %1533 = vmin.xlane.f32.xlu0 %v1532
  %v1534 = vpop.xlane.xlu0 %1533
  %vm1535 = vcmp.eq.f32.partialorder %v1532, %v1534
  %v1536 = vsel %vm1535, %v1531, inf
  %1537 = vmin.xlane.f32.xlu0 %v1536
  %v1538 = vpop.xlane.xlu0 %1537
  %v1539 = vcvt.f32.s32 %v1538
  %v1540 = vcvt.f32.s32 %v1534
  %v1541 = vshll.u32 %v1540, 16
  %v1542 = vadd.s32 %v1541, %v1539
  %v1543 = vsel %vm345, %v1437, 2147483647
  %v1544 = vand.u32 %v1543, 65535
  %v1545 = vshra.s32 %v1543, 16
  %v1546 = vcvt.s32.f32 %v1544
  %v1547 = vcvt.s32.f32 %v1545
  %1548 = vmin.xlane.f32.xlu0 %v1547
  %v1549 = vpop.xlane.xlu0 %1548
  %vm1550 = vcmp.eq.f32.partialorder %v1547, %v1549
  %v1551 = vsel %vm1550, %v1546, inf
  %1552 = vmin.xlane.f32.xlu0 %v1551
  %v1553 = vpop.xlane.xlu0 %1552
  %v1554 = vcvt.f32.s32 %v1553
  %v1555 = vcvt.f32.s32 %v1549
  %v1556 = vshll.u32 %v1555, 16
  %v1557 = vadd.s32 %v1556, %v1554
  %vm1558 = vcmp.eq.s32.totalorder %v456, %v1452
  %vm1559 = vcmp.eq.s32.totalorder %v456, %v1467
  %vm1560 = vcmp.eq.s32.totalorder %v456, %v1482
  %vm1561 = vcmp.eq.s32.totalorder %v456, %v1497
  %vm1562 = vcmp.eq.s32.totalorder %v456, %v1512
  %vm1563 = vcmp.eq.s32.totalorder %v456, %v1527
  %vm1564 = vcmp.eq.s32.totalorder %v456, %v1542
  %vm1565 = vcmp.eq.s32.totalorder %v456, %v1557
  %v1566 = vsub.f32 %v1400, %v1073
  %v1567 = vsub.f32 %v1403, %v1076
  %v1568 = vsub.f32 %v1406, %v1079
  %v1569 = vsub.f32 %v1409, %v1082
  %v1570 = vsub.f32 %v1412, %v1085
  %v1571 = vsub.f32 %v1415, %v1088
  %v1572 = vsub.f32 %v1418, %v1091
  %v1573 = vsub.f32 %v1421, %v1094
  %v1574 = vmul.f32 %v1566, 1.442695
  %v1575 = vpow.pop %v1574
  %v1576 = vmul.f32 %v1567, 1.442695
  %v1577 = vpow.pop %v1576
  %v1578 = vmul.f32 %v1568, 1.442695
  %v1579 = vpow.pop %v1578
  %v1580 = vmul.f32 %v1569, 1.442695
  %v1581 = vpow.pop %v1580
  %v1582 = vmul.f32 %v1570, 1.442695
  %v1583 = vpow.pop %v1582
  %v1584 = vmul.f32 %v1571, 1.442695
  %v1585 = vpow.pop %v1584
  %v1586 = vmul.f32 %v1572, 1.442695
  %v1587 = vpow.pop %v1586
  %v1588 = vmul.f32 %v1573, 1.442695
  %v1589 = vpow.pop %v1588
  %v1590 = vadd.f32 %v1575, 1.0
  %v1591 = vadd.f32 %v1577, 1.0
  %v1592 = vadd.f32 %v1579, 1.0
  %v1593 = vadd.f32 %v1581, 1.0
  %v1594 = vadd.f32 %v1583, 1.0
  %v1595 = vadd.f32 %v1585, 1.0
  %v1596 = vadd.f32 %v1587, 1.0
  %v1597 = vadd.f32 %v1589, 1.0
  %v1598 = vrcp.pop %v1590
  %v1599 = vrcp.pop %v1591
  %v1600 = vrcp.pop %v1592
  %v1601 = vrcp.pop %v1593
  %v1602 = vrcp.pop %v1594
  %v1603 = vrcp.pop %v1595
  %v1604 = vrcp.pop %v1596
  %v1605 = vrcp.pop %v1597
  %v1606 = vsel %vm1350, 1, 0
  %v1607 = vsel %vm1351, 1, 0
  %v1608 = vsel %vm1352, 1, 0
  %v1609 = vsel %vm1353, 1, 0
  %v1610 = vsel %vm1354, 1, 0
  %v1611 = vsel %vm1355, 1, 0
  %v1612 = vsel %vm1356, 1, 0
  %v1613 = vsel %vm1357, 1, 0
  %v1614 = vcvt.s32.f32 %v1606
  %v1615 = vcvt.s32.f32 %v1607
  %v1616 = vcvt.s32.f32 %v1608
  %v1617 = vcvt.s32.f32 %v1609
  %v1618 = vcvt.s32.f32 %v1610
  %v1619 = vcvt.s32.f32 %v1611
  %v1620 = vcvt.s32.f32 %v1612
  %v1621 = vcvt.s32.f32 %v1613
  %v1622 = vmul.f32 %v1598, %v1614
  %v1623 = vmul.f32 %v1599, %v1615
  %v1624 = vmul.f32 %v1600, %v1616
  %v1625 = vmul.f32 %v1601, %v1617
  %v1626 = vmul.f32 %v1602, %v1618
  %v1627 = vmul.f32 %v1603, %v1619
  %v1628 = vmul.f32 %v1604, %v1620
  %v1629 = vmul.f32 %v1605, %v1621
  %v1630 = vmul.f32 %v1575, %v1598
  %v1631 = vmul.f32 %v1577, %v1599
  %v1632 = vmul.f32 %v1579, %v1600
  %v1633 = vmul.f32 %v1581, %v1601
  %v1634 = vmul.f32 %v1583, %v1602
  %v1635 = vmul.f32 %v1585, %v1603
  %v1636 = vmul.f32 %v1587, %v1604
  %v1637 = vmul.f32 %v1589, %v1605
  %v1638 = vsel %vm1558, 1, 0
  %v1639 = vsel %vm1559, 1, 0
  %v1640 = vsel %vm1560, 1, 0
  %v1641 = vsel %vm1561, 1, 0
  %v1642 = vsel %vm1562, 1, 0
  %v1643 = vsel %vm1563, 1, 0
  %v1644 = vsel %vm1564, 1, 0
  %v1645 = vsel %vm1565, 1, 0
  %v1646 = vcvt.s32.f32 %v1638
  %v1647 = vcvt.s32.f32 %v1639
  %v1648 = vcvt.s32.f32 %v1640
  %v1649 = vcvt.s32.f32 %v1641
  %v1650 = vcvt.s32.f32 %v1642
  %v1651 = vcvt.s32.f32 %v1643
  %v1652 = vcvt.s32.f32 %v1644
  %v1653 = vcvt.s32.f32 %v1645
  %v1654 = vmul.f32 %v1630, %v1646
  %v1655 = vmul.f32 %v1631, %v1647
  %v1656 = vmul.f32 %v1632, %v1648
  %v1657 = vmul.f32 %v1633, %v1649
  %v1658 = vmul.f32 %v1634, %v1650
  %v1659 = vmul.f32 %v1635, %v1651
  %v1660 = vmul.f32 %v1636, %v1652
  %v1661 = vmul.f32 %v1637, %v1653
  %v1662 = vadd.f32 %v1622, %v1654
  %v1663 = vadd.f32 %v1623, %v1655
  %v1664 = vadd.f32 %v1624, %v1656
  %v1665 = vadd.f32 %v1625, %v1657
  %v1666 = vadd.f32 %v1626, %v1658
  %v1667 = vadd.f32 %v1627, %v1659
  %v1668 = vadd.f32 %v1628, %v1660
  %v1669 = vadd.f32 %v1629, %v1661
  %v1671 = vsel %vm345, %v1662, 0
  %v1674 = vsel %vm345, %v1663, 0
  %v1677 = vsel %vm345, %v1664, 0
  %v1680 = vsel %vm345, %v1665, 0
  %v1683 = vsel %vm345, %v1666, 0
  %v1686 = vsel %vm345, %v1667, 0
  %v1689 = vsel %vm345, %v1668, 0
  %v1692 = vsel %vm345, %v1669, 0
  %1694 = vmatprep.subr.mxu0 0.0
  %1695 = vmatpush1.msra.mxu0 %v907
  %1696 = vmatprep.subr.mxu0 0.0
  %1697 = vmatpush1.msra.mxu0 0.0
  %1698 = vmatprep.subr.mxu0 0.0
  %1699 = vmatpush1.msra.mxu0 0.0
  %1700 = vmatprep.subr.mxu0 0.0
  %1701 = vmatpush1.msra.mxu0 0.0
  %1702 = vmatprep.subr.mxu0 0.0
  %1703 = vmatpush1.msra.mxu0 0.0
  %1704 = vmatprep.subr.mxu0 0.0
  %1705 = vmatpush1.msra.mxu0 0.0
  %1706 = vmatprep.subr.mxu0 0.0
  %1707 = vmatpush1.msra.mxu0 0.0
  %1708 = vmatprep.subr.mxu0 0.0
  %1709 = vmatpush1.msra.mxu0 0.0
  %1710 = vmatprep.subr.mxu0 0.0
  %1711 = vmatpush1.msra.mxu0 0.0
  %1712 = vmatprep.subr.mxu0 0.0
  %1713 = vmatpush1.msra.mxu0 0.0
  %1714 = vmatprep.subr.mxu0 0.0
  %1715 = vmatpush1.msra.mxu0 0.0
  %1716 = vmatprep.subr.mxu0 0.0
  %1717 = vmatpush1.msra.mxu0 0.0
  %1718 = vmatprep.subr.mxu0 0.0
  %1719 = vmatpush1.msra.mxu0 0.0
  %1720 = vmatprep.subr.mxu0 0.0
  %1721 = vmatpush1.msra.mxu0 0.0
  %1722 = vmatprep.subr.mxu0 0.0
  %1723 = vmatpush1.msra.mxu0 0.0
  %1724 = vmatprep.subr.mxu0 0.0
  %1725 = vmatpush1.msra.mxu0 0.0
  %1726 = vmatprep.subr.mxu0 0.0
  %1727 = vmatpush1.msra.mxu0 0.0
  %1728 = vmatprep.subr.mxu0 0.0
  %1729 = vmatpush1.msra.mxu0 0.0
  %1730 = vmatprep.subr.mxu0 0.0
  %1731 = vmatpush1.msra.mxu0 0.0
  %1732 = vmatprep.subr.mxu0 0.0
  %1733 = vmatpush1.msra.mxu0 0.0
  %1734 = vmatprep.subr.mxu0 0.0
  %1735 = vmatpush1.msra.mxu0 0.0
  %1736 = vmatprep.subr.mxu0 0.0
  %1737 = vmatpush1.msra.mxu0 0.0
  %1738 = vmatprep.subr.mxu0 0.0
  %1739 = vmatpush1.msra.mxu0 0.0
  %1740 = vmatprep.subr.mxu0 0.0
  %1741 = vmatpush1.msra.mxu0 0.0
  %1742 = vmatprep.subr.mxu0 0.0
  %1743 = vmatpush1.msra.mxu0 0.0
  %1744 = vmatprep.subr.mxu0 0.0
  %1745 = vmatpush1.msra.mxu0 0.0
  %1746 = vmatprep.subr.mxu0 0.0
  %1747 = vmatpush1.msra.mxu0 0.0
  %1748 = vmatprep.subr.mxu0 0.0
  %1749 = vmatpush1.msra.mxu0 0.0
  %1750 = vmatprep.subr.mxu0 0.0
  %1751 = vmatpush1.msra.mxu0 0.0
  %1752 = vmatprep.subr.mxu0 0.0
  %1753 = vmatpush1.msra.mxu0 0.0
  %1754 = vmatprep.subr.mxu0 0.0
  %1755 = vmatpush1.msra.mxu0 0.0
  %1756 = vmatprep.subr.mxu0 0.0
  %1757 = vmatpush1.msra.mxu0 0.0
  %1758 = vmatprep.mubr.f32.mxu0 0.0
  %1759 = vmatmul.mubr.f32.gmra.mrb[0].mxu0 %v1671
  %v1760 = vpop.f32.mrb[0].mxu0
  %v1761 = vadd.f32 0.0, %v1760
  %v1762 = vpop.f32.mrb[0].mxu0
  %1763 = vmatprep.mubr.f32.mxu0 0.0
  %1764 = vmatmul.mubr.f32.gmra.mrb[0].mxu0 %v1674
  %v1765 = vpop.f32.mrb[0].mxu0
  %v1766 = vadd.f32 0.0, %v1765
  %v1767 = vpop.f32.mrb[0].mxu0
  %1768 = vmatprep.mubr.f32.mxu0 0.0
  %1769 = vmatmul.mubr.f32.gmra.mrb[0].mxu0 %v1677
  %v1770 = vpop.f32.mrb[0].mxu0
  %v1771 = vadd.f32 0.0, %v1770
  %v1772 = vpop.f32.mrb[0].mxu0
  %1773 = vmatprep.mubr.f32.mxu0 0.0
  %1774 = vmatmul.mubr.f32.gmra.mrb[0].mxu0 %v1680
  %v1775 = vpop.f32.mrb[0].mxu0
  %v1776 = vadd.f32 0.0, %v1775
  %v1777 = vpop.f32.mrb[0].mxu0
  %1778 = vmatprep.mubr.f32.mxu0 0.0
  %1779 = vmatmul.mubr.f32.gmra.mrb[0].mxu0 %v1683
  %v1780 = vpop.f32.mrb[0].mxu0
  %v1781 = vadd.f32 0.0, %v1780
  %v1782 = vpop.f32.mrb[0].mxu0
  %1783 = vmatprep.mubr.f32.mxu0 0.0
  %1784 = vmatmul.mubr.f32.gmra.mrb[0].mxu0 %v1686
  %v1785 = vpop.f32.mrb[0].mxu0
  %v1786 = vadd.f32 0.0, %v1785
  %v1787 = vpop.f32.mrb[0].mxu0
  %1788 = vmatprep.mubr.f32.mxu0 0.0
  %1789 = vmatmul.mubr.f32.gmra.mrb[0].mxu0 %v1689
  %v1790 = vpop.f32.mrb[0].mxu0
  %v1791 = vadd.f32 0.0, %v1790
  %v1792 = vpop.f32.mrb[0].mxu0
  %1793 = vmatprep.mubr.f32.mxu0 0.0
  %1794 = vmatmul.mubr.f32.gmra.mrb[0].mxu0 %v1692
  %v1795 = vpop.f32.mrb[0].mxu0
  %v1796 = vadd.f32 0.0, %v1795
  %v1797 = vpop.f32.mrb[0].mxu0
  %1798 = vdwg.mxu0
  %v1799 = vmul.f32 %v195, %v1761
  %v1800 = vmul.f32 %v201, %v1766
  %v1801 = vmul.f32 %v207, %v1771
  %v1802 = vmul.f32 %v213, %v1776
  %v1803 = vmul.f32 %v219, %v1781
  %v1804 = vmul.f32 %v225, %v1786
  %v1805 = vmul.f32 %v231, %v1791
  %v1806 = vmul.f32 %v237, %v1796
  %1807 = vrot.lane.b32.xlu0 %v1799, 64
  %v1808 = vpop.permute.xlu0 %1807
  %1809 = vrot.lane.b32.xlu0 %v1800, 64
  %v1810 = vpop.permute.xlu0 %1809
  %1811 = vrot.lane.b32.xlu0 %v1801, 64
  %v1812 = vpop.permute.xlu0 %1811
  %1813 = vrot.lane.b32.xlu0 %v1802, 64
  %v1814 = vpop.permute.xlu0 %1813
  %1815 = vrot.lane.b32.xlu0 %v1803, 64
  %v1816 = vpop.permute.xlu0 %1815
  %1817 = vrot.lane.b32.xlu0 %v1804, 64
  %v1818 = vpop.permute.xlu0 %1817
  %1819 = vrot.lane.b32.xlu0 %v1805, 64
  %v1820 = vpop.permute.xlu0 %1819
  %1821 = vrot.lane.b32.xlu0 %v1806, 64
  %v1822 = vpop.permute.xlu0 %1821
  %v1823 = vadd.f32 %v1799, %v1808
  %v1824 = vadd.f32 %v1800, %v1810
  %v1825 = vadd.f32 %v1801, %v1812
  %v1826 = vadd.f32 %v1802, %v1814
  %v1827 = vadd.f32 %v1803, %v1816
  %v1828 = vadd.f32 %v1804, %v1818
  %v1829 = vadd.f32 %v1805, %v1820
  %v1830 = vadd.f32 %v1806, %v1822
  %1831 = vrot.lane.b32.xlu0 %v1823, 96
  %v1832 = vpop.permute.xlu0 %1831
  %1833 = vrot.lane.b32.xlu0 %v1824, 96
  %v1834 = vpop.permute.xlu0 %1833
  %1835 = vrot.lane.b32.xlu0 %v1825, 96
  %v1836 = vpop.permute.xlu0 %1835
  %1837 = vrot.lane.b32.xlu0 %v1826, 96
  %v1838 = vpop.permute.xlu0 %1837
  %1839 = vrot.lane.b32.xlu0 %v1827, 96
  %v1840 = vpop.permute.xlu0 %1839
  %1841 = vrot.lane.b32.xlu0 %v1828, 96
  %v1842 = vpop.permute.xlu0 %1841
  %1843 = vrot.lane.b32.xlu0 %v1829, 96
  %v1844 = vpop.permute.xlu0 %1843
  %1845 = vrot.lane.b32.xlu0 %v1830, 96
  %v1846 = vpop.permute.xlu0 %1845
  %v1847 = vadd.f32 %v1823, %v1832
  %v1848 = vadd.f32 %v1824, %v1834
  %v1849 = vadd.f32 %v1825, %v1836
  %v1850 = vadd.f32 %v1826, %v1838
  %v1851 = vadd.f32 %v1827, %v1840
  %v1852 = vadd.f32 %v1828, %v1842
  %v1853 = vadd.f32 %v1829, %v1844
  %v1854 = vadd.f32 %v1830, %v1846
  %v1855 = vld [vmem:[%s4] sm:$0xff]
  %v1856 = vld [vmem:[%s4 + $0x8] sm:$0xff]
  %v1857 = vld [vmem:[%s4 + $0x10] sm:$0xff]
  %v1858 = vld [vmem:[%s4 + $0x18] sm:$0xff]
  %v1859 = vld [vmem:[%s5] sm:$0xff]
  %v1860 = vld [vmem:[%s5 + $0x8] sm:$0xff]
  %v1861 = vld [vmem:[%s5 + $0x10] sm:$0xff]
  %v1862 = vld [vmem:[%s5 + $0x18] sm:$0xff]
  %vm1863 = vcmask 261120
  %v1865 = vsel %vm1863, %v1847, 0
  %v1868 = vsel %vm1863, %v1848, 0
  %v1871 = vsel %vm1863, %v1849, 0
  %v1874 = vsel %vm1863, %v1850, 0
  %v1877 = vsel %vm1863, %v1851, 0
  %v1880 = vsel %vm1863, %v1852, 0
  %v1883 = vsel %vm1863, %v1853, 0
  %v1886 = vsel %vm1863, %v1854, 0
  %1888 = vmatprep.subr.mxu0 0.0
  %1889 = vmatpush1.msra.mxu0 %v1859
  %1890 = vmatprep.subr.mxu0 0.0
  %1891 = vmatpush1.msra.mxu0 %v1860
  %1892 = vmatprep.subr.mxu0 0.0
  %1893 = vmatpush1.msra.mxu0 %v1861
  %1894 = vmatprep.subr.mxu0 0.0
  %1895 = vmatpush1.msra.mxu0 %v1862
  %1896 = vmatprep.subr.mxu0 0.0
  %1897 = vmatpush1.msra.mxu0 0.0
  %1898 = vmatprep.subr.mxu0 0.0
  %1899 = vmatpush1.msra.mxu0 0.0
  %1900 = vmatprep.subr.mxu0 0.0
  %1901 = vmatpush1.msra.mxu0 0.0
  %1902 = vmatprep.subr.mxu0 0.0
  %1903 = vmatpush1.msra.mxu0 0.0
  %1904 = vmatprep.subr.mxu0 0.0
  %1905 = vmatpush1.msra.mxu0 0.0
  %1906 = vmatprep.subr.mxu0 0.0
  %1907 = vmatpush1.msra.mxu0 0.0
  %1908 = vmatprep.subr.mxu0 0.0
  %1909 = vmatpush1.msra.mxu0 0.0
  %1910 = vmatprep.subr.mxu0 0.0
  %1911 = vmatpush1.msra.mxu0 0.0
  %1912 = vmatprep.subr.mxu0 0.0
  %1913 = vmatpush1.msra.mxu0 0.0
  %1914 = vmatprep.subr.mxu0 0.0
  %1915 = vmatpush1.msra.mxu0 0.0
  %1916 = vmatprep.subr.mxu0 0.0
  %1917 = vmatpush1.msra.mxu0 0.0
  %1918 = vmatprep.subr.mxu0 0.0
  %1919 = vmatpush1.msra.mxu0 0.0
  %1920 = vmatprep.subr.mxu0 0.0
  %1921 = vmatpush1.msra.mxu0 0.0
  %1922 = vmatprep.subr.mxu0 0.0
  %1923 = vmatpush1.msra.mxu0 0.0
  %1924 = vmatprep.subr.mxu0 0.0
  %1925 = vmatpush1.msra.mxu0 0.0
  %1926 = vmatprep.subr.mxu0 0.0
  %1927 = vmatpush1.msra.mxu0 0.0
  %1928 = vmatprep.subr.mxu0 0.0
  %1929 = vmatpush1.msra.mxu0 0.0
  %1930 = vmatprep.subr.mxu0 0.0
  %1931 = vmatpush1.msra.mxu0 0.0
  %1932 = vmatprep.subr.mxu0 0.0
  %1933 = vmatpush1.msra.mxu0 0.0
  %1934 = vmatprep.subr.mxu0 0.0
  %1935 = vmatpush1.msra.mxu0 0.0
  %1936 = vmatprep.subr.mxu0 0.0
  %1937 = vmatpush1.msra.mxu0 0.0
  %1938 = vmatprep.subr.mxu0 0.0
  %1939 = vmatpush1.msra.mxu0 0.0
  %1940 = vmatprep.subr.mxu0 0.0
  %1941 = vmatpush1.msra.mxu0 0.0
  %1942 = vmatprep.subr.mxu0 0.0
  %1943 = vmatpush1.msra.mxu0 0.0
  %1944 = vmatprep.subr.mxu0 0.0
  %1945 = vmatpush1.msra.mxu0 0.0
  %1946 = vmatprep.subr.mxu0 0.0
  %1947 = vmatpush1.msra.mxu0 0.0
  %1948 = vmatprep.subr.mxu0 0.0
  %1949 = vmatpush1.msra.mxu0 0.0
  %1950 = vmatprep.subr.mxu0 0.0
  %1951 = vmatpush1.msra.mxu0 0.0
  %1952 = vmatprep.mubr.f32.mxu0 0.0
  %1953 = vmatmul.mubr.f32.gmra.mrb[0].mxu0 %v1865
  %v1954 = vpop.f32.mrb[0].mxu0
  %v1955 = vadd.f32 0.0, %v1954
  %v1956 = vpop.f32.mrb[0].mxu0
  %1957 = vmatprep.mubr.f32.mxu0 0.0
  %1958 = vmatmul.mubr.f32.gmra.mrb[0].mxu0 %v1868
  %v1959 = vpop.f32.mrb[0].mxu0
  %v1960 = vadd.f32 0.0, %v1959
  %v1961 = vpop.f32.mrb[0].mxu0
  %1962 = vmatprep.mubr.f32.mxu0 0.0
  %1963 = vmatmul.mubr.f32.gmra.mrb[0].mxu0 %v1871
  %v1964 = vpop.f32.mrb[0].mxu0
  %v1965 = vadd.f32 0.0, %v1964
  %v1966 = vpop.f32.mrb[0].mxu0
  %1967 = vmatprep.mubr.f32.mxu0 0.0
  %1968 = vmatmul.mubr.f32.gmra.mrb[0].mxu0 %v1874
  %v1969 = vpop.f32.mrb[0].mxu0
  %v1970 = vadd.f32 0.0, %v1969
  %v1971 = vpop.f32.mrb[0].mxu0
  %1972 = vmatprep.mubr.f32.mxu0 0.0
  %1973 = vmatmul.mubr.f32.gmra.mrb[0].mxu0 %v1877
  %v1974 = vpop.f32.mrb[0].mxu0
  %v1975 = vadd.f32 0.0, %v1974
  %v1976 = vpop.f32.mrb[0].mxu0
  %1977 = vmatprep.mubr.f32.mxu0 0.0
  %1978 = vmatmul.mubr.f32.gmra.mrb[0].mxu0 %v1880
  %v1979 = vpop.f32.mrb[0].mxu0
  %v1980 = vadd.f32 0.0, %v1979
  %v1981 = vpop.f32.mrb[0].mxu0
  %1982 = vmatprep.mubr.f32.mxu0 0.0
  %1983 = vmatmul.mubr.f32.gmra.mrb[0].mxu0 %v1883
  %v1984 = vpop.f32.mrb[0].mxu0
  %v1985 = vadd.f32 0.0, %v1984
  %v1986 = vpop.f32.mrb[0].mxu0
  %1987 = vmatprep.mubr.f32.mxu0 0.0
  %1988 = vmatmul.mubr.f32.gmra.mrb[0].mxu0 %v1886
  %v1989 = vpop.f32.mrb[0].mxu0
  %v1990 = vadd.f32 0.0, %v1989
  %v1991 = vpop.f32.mrb[0].mxu0
  %1992 = vdwg.mxu0
  %v1994 = vsel %vm1863, %v1062, 0
  %v1997 = vsel %vm1863, %v1063, 0
  %v2000 = vsel %vm1863, %v1064, 0
  %v2003 = vsel %vm1863, %v1065, 0
  %v2006 = vsel %vm1863, %v1066, 0
  %v2009 = vsel %vm1863, %v1067, 0
  %v2012 = vsel %vm1863, %v1068, 0
  %v2015 = vsel %vm1863, %v1069, 0
  %2017 = vmatprep.subr.mxu0 0.0
  %2018 = vmatpush1.msra.mxu0 %v1855
  %2019 = vmatprep.subr.mxu0 0.0
  %2020 = vmatpush1.msra.mxu0 %v1856
  %2021 = vmatprep.subr.mxu0 0.0
  %2022 = vmatpush1.msra.mxu0 %v1857
  %2023 = vmatprep.subr.mxu0 0.0
  %2024 = vmatpush1.msra.mxu0 %v1858
  %2025 = vmatprep.subr.mxu0 0.0
  %2026 = vmatpush1.msra.mxu0 0.0
  %2027 = vmatprep.subr.mxu0 0.0
  %2028 = vmatpush1.msra.mxu0 0.0
  %2029 = vmatprep.subr.mxu0 0.0
  %2030 = vmatpush1.msra.mxu0 0.0
  %2031 = vmatprep.subr.mxu0 0.0
  %2032 = vmatpush1.msra.mxu0 0.0
  %2033 = vmatprep.subr.mxu0 0.0
  %2034 = vmatpush1.msra.mxu0 0.0
  %2035 = vmatprep.subr.mxu0 0.0
  %2036 = vmatpush1.msra.mxu0 0.0
  %2037 = vmatprep.subr.mxu0 0.0
  %2038 = vmatpush1.msra.mxu0 0.0
  %2039 = vmatprep.subr.mxu0 0.0
  %2040 = vmatpush1.msra.mxu0 0.0
  %2041 = vmatprep.subr.mxu0 0.0
  %2042 = vmatpush1.msra.mxu0 0.0
  %2043 = vmatprep.subr.mxu0 0.0
  %2044 = vmatpush1.msra.mxu0 0.0
  %2045 = vmatprep.subr.mxu0 0.0
  %2046 = vmatpush1.msra.mxu0 0.0
  %2047 = vmatprep.subr.mxu0 0.0
  %2048 = vmatpush1.msra.mxu0 0.0
  %2049 = vmatprep.subr.mxu0 0.0
  %2050 = vmatpush1.msra.mxu0 0.0
  %2051 = vmatprep.subr.mxu0 0.0
  %2052 = vmatpush1.msra.mxu0 0.0
  %2053 = vmatprep.subr.mxu0 0.0
  %2054 = vmatpush1.msra.mxu0 0.0
  %2055 = vmatprep.subr.mxu0 0.0
  %2056 = vmatpush1.msra.mxu0 0.0
  %2057 = vmatprep.subr.mxu0 0.0
  %2058 = vmatpush1.msra.mxu0 0.0
  %2059 = vmatprep.subr.mxu0 0.0
  %2060 = vmatpush1.msra.mxu0 0.0
  %2061 = vmatprep.subr.mxu0 0.0
  %2062 = vmatpush1.msra.mxu0 0.0
  %2063 = vmatprep.subr.mxu0 0.0
  %2064 = vmatpush1.msra.mxu0 0.0
  %2065 = vmatprep.subr.mxu0 0.0
  %2066 = vmatpush1.msra.mxu0 0.0
  %2067 = vmatprep.subr.mxu0 0.0
  %2068 = vmatpush1.msra.mxu0 0.0
  %2069 = vmatprep.subr.mxu0 0.0
  %2070 = vmatpush1.msra.mxu0 0.0
  %2071 = vmatprep.subr.mxu0 0.0
  %2072 = vmatpush1.msra.mxu0 0.0
  %2073 = vmatprep.subr.mxu0 0.0
  %2074 = vmatpush1.msra.mxu0 0.0
  %2075 = vmatprep.subr.mxu0 0.0
  %2076 = vmatpush1.msra.mxu0 0.0
  %2077 = vmatprep.subr.mxu0 0.0
  %2078 = vmatpush1.msra.mxu0 0.0
  %2079 = vmatprep.subr.mxu0 0.0
  %2080 = vmatpush1.msra.mxu0 0.0
  %2081 = vmatprep.mubr.f32.mxu0 0.0
  %2082 = vmatmul.mubr.f32.gmra.mrb[0].mxu0 %v1994
  %v2083 = vpop.f32.mrb[0].mxu0
  %v2084 = vadd.f32 %v1955, %v2083
  %v2085 = vpop.f32.mrb[0].mxu0
  %2086 = vmatprep.mubr.f32.mxu0 0.0
  %2087 = vmatmul.mubr.f32.gmra.mrb[0].mxu0 %v1997
  %v2088 = vpop.f32.mrb[0].mxu0
  %v2089 = vadd.f32 %v1960, %v2088
  %v2090 = vpop.f32.mrb[0].mxu0
  %2091 = vmatprep.mubr.f32.mxu0 0.0
  %2092 = vmatmul.mubr.f32.gmra.mrb[0].mxu0 %v2000
  %v2093 = vpop.f32.mrb[0].mxu0
  %v2094 = vadd.f32 %v1965, %v2093
  %v2095 = vpop.f32.mrb[0].mxu0
  %2096 = vmatprep.mubr.f32.mxu0 0.0
  %2097 = vmatmul.mubr.f32.gmra.mrb[0].mxu0 %v2003
  %v2098 = vpop.f32.mrb[0].mxu0
  %v2099 = vadd.f32 %v1970, %v2098
  %v2100 = vpop.f32.mrb[0].mxu0
  %2101 = vmatprep.mubr.f32.mxu0 0.0
  %2102 = vmatmul.mubr.f32.gmra.mrb[0].mxu0 %v2006
  %v2103 = vpop.f32.mrb[0].mxu0
  %v2104 = vadd.f32 %v1975, %v2103
  %v2105 = vpop.f32.mrb[0].mxu0
  %2106 = vmatprep.mubr.f32.mxu0 0.0
  %2107 = vmatmul.mubr.f32.gmra.mrb[0].mxu0 %v2009
  %v2108 = vpop.f32.mrb[0].mxu0
  %v2109 = vadd.f32 %v1980, %v2108
  %v2110 = vpop.f32.mrb[0].mxu0
  %2111 = vmatprep.mubr.f32.mxu0 0.0
  %2112 = vmatmul.mubr.f32.gmra.mrb[0].mxu0 %v2012
  %v2113 = vpop.f32.mrb[0].mxu0
  %v2114 = vadd.f32 %v1985, %v2113
  %v2115 = vpop.f32.mrb[0].mxu0
  %2116 = vmatprep.mubr.f32.mxu0 0.0
  %2117 = vmatmul.mubr.f32.gmra.mrb[0].mxu0 %v2015
  %v2118 = vpop.f32.mrb[0].mxu0
  %v2119 = vadd.f32 %v1990, %v2118
  %v2120 = vpop.f32.mrb[0].mxu0
  %2121 = vdwg.mxu0
  %v2122 = vld [vmem:[%s6] sm:$0x1]
  %v2124 = vlaneseq
  %v2125 = vshrl.u32 %v2124, 7
  %v2126 = vsub.s32 0, %v2125
  %v2127 = vrot.slane %v2122, %v2126
  %v2129 = vadd.f32 %v2084, %v2127
  %v2130 = vadd.f32 %v2089, %v2127
  %v2131 = vadd.f32 %v2094, %v2127
  %v2132 = vadd.f32 %v2099, %v2127
  %v2133 = vadd.f32 %v2104, %v2127
  %v2134 = vadd.f32 %v2109, %v2127
  %v2135 = vadd.f32 %v2114, %v2127
  %v2136 = vadd.f32 %v2119, %v2127
  %v2137 = vmax.f32 %v2129, 0.0
  %v2138 = vmax.f32 %v2130, 0.0
  %v2139 = vmax.f32 %v2131, 0.0
  %v2140 = vmax.f32 %v2132, 0.0
  %v2141 = vmax.f32 %v2133, 0.0
  %v2142 = vmax.f32 %v2134, 0.0
  %v2143 = vmax.f32 %v2135, 0.0
  %v2144 = vmax.f32 %v2136, 0.0
  %v2145 = vld [vmem:[%s7] sm:$0xff]
  %v2146 = vld [vmem:[%s7 + $0x8] sm:$0xff]
  %v2147 = vld [vmem:[%s7 + $0x10] sm:$0xff]
  %v2148 = vld [vmem:[%s7 + $0x18] sm:$0xff]
  %v2149 = vld [vmem:[%s8] sm:$0x1]
  %v2151 = vlaneseq
  %v2152 = vshrl.u32 %v2151, 7
  %v2153 = vsub.s32 0, %v2152
  %v2154 = vrot.slane %v2149, %v2153
  %v2157 = vsel %vm1863, %v2137, 0
  %v2160 = vsel %vm1863, %v2138, 0
  %v2163 = vsel %vm1863, %v2139, 0
  %v2166 = vsel %vm1863, %v2140, 0
  %v2169 = vsel %vm1863, %v2141, 0
  %v2172 = vsel %vm1863, %v2142, 0
  %v2175 = vsel %vm1863, %v2143, 0
  %v2178 = vsel %vm1863, %v2144, 0
  %2180 = vmatprep.subr.mxu0 0.0
  %2181 = vmatpush1.msra.mxu0 %v2145
  %2182 = vmatprep.subr.mxu0 0.0
  %2183 = vmatpush1.msra.mxu0 %v2146
  %2184 = vmatprep.subr.mxu0 0.0
  %2185 = vmatpush1.msra.mxu0 %v2147
  %2186 = vmatprep.subr.mxu0 0.0
  %2187 = vmatpush1.msra.mxu0 %v2148
  %2188 = vmatprep.subr.mxu0 0.0
  %2189 = vmatpush1.msra.mxu0 0.0
  %2190 = vmatprep.subr.mxu0 0.0
  %2191 = vmatpush1.msra.mxu0 0.0
  %2192 = vmatprep.subr.mxu0 0.0
  %2193 = vmatpush1.msra.mxu0 0.0
  %2194 = vmatprep.subr.mxu0 0.0
  %2195 = vmatpush1.msra.mxu0 0.0
  %2196 = vmatprep.subr.mxu0 0.0
  %2197 = vmatpush1.msra.mxu0 0.0
  %2198 = vmatprep.subr.mxu0 0.0
  %2199 = vmatpush1.msra.mxu0 0.0
  %2200 = vmatprep.subr.mxu0 0.0
  %2201 = vmatpush1.msra.mxu0 0.0
  %2202 = vmatprep.subr.mxu0 0.0
  %2203 = vmatpush1.msra.mxu0 0.0
  %2204 = vmatprep.subr.mxu0 0.0
  %2205 = vmatpush1.msra.mxu0 0.0
  %2206 = vmatprep.subr.mxu0 0.0
  %2207 = vmatpush1.msra.mxu0 0.0
  %2208 = vmatprep.subr.mxu0 0.0
  %2209 = vmatpush1.msra.mxu0 0.0
  %2210 = vmatprep.subr.mxu0 0.0
  %2211 = vmatpush1.msra.mxu0 0.0
  %2212 = vmatprep.subr.mxu0 0.0
  %2213 = vmatpush1.msra.mxu0 0.0
  %2214 = vmatprep.subr.mxu0 0.0
  %2215 = vmatpush1.msra.mxu0 0.0
  %2216 = vmatprep.subr.mxu0 0.0
  %2217 = vmatpush1.msra.mxu0 0.0
  %2218 = vmatprep.subr.mxu0 0.0
  %2219 = vmatpush1.msra.mxu0 0.0
  %2220 = vmatprep.subr.mxu0 0.0
  %2221 = vmatpush1.msra.mxu0 0.0
  %2222 = vmatprep.subr.mxu0 0.0
  %2223 = vmatpush1.msra.mxu0 0.0
  %2224 = vmatprep.subr.mxu0 0.0
  %2225 = vmatpush1.msra.mxu0 0.0
  %2226 = vmatprep.subr.mxu0 0.0
  %2227 = vmatpush1.msra.mxu0 0.0
  %2228 = vmatprep.subr.mxu0 0.0
  %2229 = vmatpush1.msra.mxu0 0.0
  %2230 = vmatprep.subr.mxu0 0.0
  %2231 = vmatpush1.msra.mxu0 0.0
  %2232 = vmatprep.subr.mxu0 0.0
  %2233 = vmatpush1.msra.mxu0 0.0
  %2234 = vmatprep.subr.mxu0 0.0
  %2235 = vmatpush1.msra.mxu0 0.0
  %2236 = vmatprep.subr.mxu0 0.0
  %2237 = vmatpush1.msra.mxu0 0.0
  %2238 = vmatprep.subr.mxu0 0.0
  %2239 = vmatpush1.msra.mxu0 0.0
  %2240 = vmatprep.subr.mxu0 0.0
  %2241 = vmatpush1.msra.mxu0 0.0
  %2242 = vmatprep.subr.mxu0 0.0
  %2243 = vmatpush1.msra.mxu0 0.0
  %2244 = vmatprep.mubr.f32.mxu0 0.0
  %2245 = vmatmul.mubr.f32.gmra.mrb[0].mxu0 %v2157
  %v2246 = vpop.f32.mrb[0].mxu0
  %v2247 = vadd.f32 %v2154, %v2246
  %v2248 = vpop.f32.mrb[0].mxu0
  %2249 = vmatprep.mubr.f32.mxu0 0.0
  %2250 = vmatmul.mubr.f32.gmra.mrb[0].mxu0 %v2160
  %v2251 = vpop.f32.mrb[0].mxu0
  %v2252 = vadd.f32 %v2154, %v2251
  %v2253 = vpop.f32.mrb[0].mxu0
  %2254 = vmatprep.mubr.f32.mxu0 0.0
  %2255 = vmatmul.mubr.f32.gmra.mrb[0].mxu0 %v2163
  %v2256 = vpop.f32.mrb[0].mxu0
  %v2257 = vadd.f32 %v2154, %v2256
  %v2258 = vpop.f32.mrb[0].mxu0
  %2259 = vmatprep.mubr.f32.mxu0 0.0
  %2260 = vmatmul.mubr.f32.gmra.mrb[0].mxu0 %v2166
  %v2261 = vpop.f32.mrb[0].mxu0
  %v2262 = vadd.f32 %v2154, %v2261
  %v2263 = vpop.f32.mrb[0].mxu0
  %2264 = vmatprep.mubr.f32.mxu0 0.0
  %2265 = vmatmul.mubr.f32.gmra.mrb[0].mxu0 %v2169
  %v2266 = vpop.f32.mrb[0].mxu0
  %v2267 = vadd.f32 %v2154, %v2266
  %v2268 = vpop.f32.mrb[0].mxu0
  %2269 = vmatprep.mubr.f32.mxu0 0.0
  %2270 = vmatmul.mubr.f32.gmra.mrb[0].mxu0 %v2172
  %v2271 = vpop.f32.mrb[0].mxu0
  %v2272 = vadd.f32 %v2154, %v2271
  %v2273 = vpop.f32.mrb[0].mxu0
  %2274 = vmatprep.mubr.f32.mxu0 0.0
  %2275 = vmatmul.mubr.f32.gmra.mrb[0].mxu0 %v2175
  %v2276 = vpop.f32.mrb[0].mxu0
  %v2277 = vadd.f32 %v2154, %v2276
  %v2278 = vpop.f32.mrb[0].mxu0
  %2279 = vmatprep.mubr.f32.mxu0 0.0
  %2280 = vmatmul.mubr.f32.gmra.mrb[0].mxu0 %v2178
  %v2281 = vpop.f32.mrb[0].mxu0
  %v2282 = vadd.f32 %v2154, %v2281
  %v2283 = vpop.f32.mrb[0].mxu0
  %2284 = vdwg.mxu0
  %vm2285 = vcmask 15360
  %v2286 = vsel %vm2285, %v2247, -inf
  %2287 = vmax.xlane.f32.xlu0 %v2286
  %v2288 = vpop.xlane.xlu0 %2287
  %v2289 = vsel %vm2285, %v2252, -inf
  %2290 = vmax.xlane.f32.xlu0 %v2289
  %v2291 = vpop.xlane.xlu0 %2290
  %v2292 = vsel %vm2285, %v2257, -inf
  %2293 = vmax.xlane.f32.xlu0 %v2292
  %v2294 = vpop.xlane.xlu0 %2293
  %v2295 = vsel %vm2285, %v2262, -inf
  %2296 = vmax.xlane.f32.xlu0 %v2295
  %v2297 = vpop.xlane.xlu0 %2296
  %v2298 = vsel %vm2285, %v2267, -inf
  %2299 = vmax.xlane.f32.xlu0 %v2298
  %v2300 = vpop.xlane.xlu0 %2299
  %v2301 = vsel %vm2285, %v2272, -inf
  %2302 = vmax.xlane.f32.xlu0 %v2301
  %v2303 = vpop.xlane.xlu0 %2302
  %v2304 = vsel %vm2285, %v2277, -inf
  %2305 = vmax.xlane.f32.xlu0 %v2304
  %v2306 = vpop.xlane.xlu0 %2305
  %v2307 = vsel %vm2285, %v2282, -inf
  %2308 = vmax.xlane.f32.xlu0 %v2307
  %v2309 = vpop.xlane.xlu0 %2308
  %v2310 = vsub.f32 %v2247, %v2288
  %v2311 = vsub.f32 %v2252, %v2291
  %v2312 = vsub.f32 %v2257, %v2294
  %v2313 = vsub.f32 %v2262, %v2297
  %v2314 = vsub.f32 %v2267, %v2300
  %v2315 = vsub.f32 %v2272, %v2303
  %v2316 = vsub.f32 %v2277, %v2306
  %v2317 = vsub.f32 %v2282, %v2309
  %v2318 = vmul.f32 %v2310, 1.442695
  %v2319 = vpow.pop %v2318
  %v2320 = vmul.f32 %v2311, 1.442695
  %v2321 = vpow.pop %v2320
  %v2322 = vmul.f32 %v2312, 1.442695
  %v2323 = vpow.pop %v2322
  %v2324 = vmul.f32 %v2313, 1.442695
  %v2325 = vpow.pop %v2324
  %v2326 = vmul.f32 %v2314, 1.442695
  %v2327 = vpow.pop %v2326
  %v2328 = vmul.f32 %v2315, 1.442695
  %v2329 = vpow.pop %v2328
  %v2330 = vmul.f32 %v2316, 1.442695
  %v2331 = vpow.pop %v2330
  %v2332 = vmul.f32 %v2317, 1.442695
  %v2333 = vpow.pop %v2332
  %v2334 = vsel %vm2285, %v2319, 0.0
  %2335 = vadd.xlane.f32.xlu0 %v2334
  %v2336 = vpop.xlane.xlu0 %2335
  %v2337 = vsel %vm2285, %v2321, 0.0
  %2338 = vadd.xlane.f32.xlu0 %v2337
  %v2339 = vpop.xlane.xlu0 %2338
  %v2340 = vsel %vm2285, %v2323, 0.0
  %2341 = vadd.xlane.f32.xlu0 %v2340
  %v2342 = vpop.xlane.xlu0 %2341
  %v2343 = vsel %vm2285, %v2325, 0.0
  %2344 = vadd.xlane.f32.xlu0 %v2343
  %v2345 = vpop.xlane.xlu0 %2344
  %v2346 = vsel %vm2285, %v2327, 0.0
  %2347 = vadd.xlane.f32.xlu0 %v2346
  %v2348 = vpop.xlane.xlu0 %2347
  %v2349 = vsel %vm2285, %v2329, 0.0
  %2350 = vadd.xlane.f32.xlu0 %v2349
  %v2351 = vpop.xlane.xlu0 %2350
  %v2352 = vsel %vm2285, %v2331, 0.0
  %2353 = vadd.xlane.f32.xlu0 %v2352
  %v2354 = vpop.xlane.xlu0 %2353
  %v2355 = vsel %vm2285, %v2333, 0.0
  %2356 = vadd.xlane.f32.xlu0 %v2355
  %v2357 = vpop.xlane.xlu0 %2356
  %v2358 = vrcp.pop %v2336
  %v2359 = vrcp.pop %v2339
  %v2360 = vrcp.pop %v2342
  %v2361 = vrcp.pop %v2345
  %v2362 = vrcp.pop %v2348
  %v2363 = vrcp.pop %v2351
  %v2364 = vrcp.pop %v2354
  %v2365 = vrcp.pop %v2357
  %v2366 = vmul.f32 %v2319, %v2358
  %v2367 = vmul.f32 %v2321, %v2359
  %v2368 = vmul.f32 %v2323, %v2360
  %v2369 = vmul.f32 %v2325, %v2361
  %v2370 = vmul.f32 %v2327, %v2362
  %v2371 = vmul.f32 %v2329, %v2363
  %v2372 = vmul.f32 %v2331, %v2364
  %v2373 = vmul.f32 %v2333, %v2365
  %v2374 = vsel %vm2285, %v2366, 0.0
  %v2375 = vsel %vm2285, %v2367, 0.0
  %v2376 = vadd.f32 %v2374, %v2375
  %v2377 = vsel %vm2285, %v2368, 0.0
  %v2378 = vadd.f32 %v2376, %v2377
  %v2379 = vsel %vm2285, %v2369, 0.0
  %v2380 = vadd.f32 %v2378, %v2379
  %v2381 = vsel %vm2285, %v2370, 0.0
  %v2382 = vadd.f32 %v2380, %v2381
  %v2383 = vsel %vm2285, %v2371, 0.0
  %v2384 = vadd.f32 %v2382, %v2383
  %v2385 = vsel %vm2285, %v2372, 0.0
  %v2386 = vadd.f32 %v2384, %v2385
  %v2387 = vsel %vm2285, %v2373, 0.0
  %v2388 = vadd.f32 %v2386, %v2387
  %v2389 = vrot.slane %v2388, 4
  %v2390 = vadd.f32 %v2388, %v2389
  %v2391 = vrot.slane %v2390, 2
  %v2392 = vadd.f32 %v2390, %v2391
  %v2393 = vrot.slane %v2392, 1
  %v2394 = vadd.f32 %v2392, %v2393
  %2396 = vset.pattern.permute.xlu0 0
  %2397 = vperm.xlu0 %2396, %v2366
  %v2398 = vpop.permute.xlu0 %2397
  %2401 = vset.pattern.permute.xlu0 0
  %2402 = vperm.xlu0 %2401, %v2367
  %v2403 = vpop.permute.xlu0 %2402
  %2406 = vset.pattern.permute.xlu0 0
  %2407 = vperm.xlu0 %2406, %v2368
  %v2408 = vpop.permute.xlu0 %2407
  %2411 = vset.pattern.permute.xlu0 0
  %2412 = vperm.xlu0 %2411, %v2369
  %v2413 = vpop.permute.xlu0 %2412
  %2416 = vset.pattern.permute.xlu0 0
  %2417 = vperm.xlu0 %2416, %v2370
  %v2418 = vpop.permute.xlu0 %2417
  %2421 = vset.pattern.permute.xlu0 0
  %2422 = vperm.xlu0 %2421, %v2371
  %v2423 = vpop.permute.xlu0 %2422
  %2426 = vset.pattern.permute.xlu0 0
  %2427 = vperm.xlu0 %2426, %v2372
  %v2428 = vpop.permute.xlu0 %2427
  %2431 = vset.pattern.permute.xlu0 0
  %2432 = vperm.xlu0 %2431, %v2373
  %v2433 = vpop.permute.xlu0 %2432
  %v2435 = vmul.f32 %v2398, %v1062
  %v2436 = vmul.f32 %v2403, %v1063
  %v2437 = vmul.f32 %v2408, %v1064
  %v2438 = vmul.f32 %v2413, %v1065
  %v2439 = vmul.f32 %v2418, %v1066
  %v2440 = vmul.f32 %v2423, %v1067
  %v2441 = vmul.f32 %v2428, %v1068
  %v2442 = vmul.f32 %v2433, %v1069
  %2443 = vset.pattern.permute.xlu0 1
  %2444 = vperm.xlu0 %2443, %v2366
  %v2445 = vpop.permute.xlu0 %2444
  %2447 = vset.pattern.permute.xlu0 1
  %2448 = vperm.xlu0 %2447, %v2367
  %v2449 = vpop.permute.xlu0 %2448
  %2451 = vset.pattern.permute.xlu0 1
  %2452 = vperm.xlu0 %2451, %v2368
  %v2453 = vpop.permute.xlu0 %2452
  %2455 = vset.pattern.permute.xlu0 1
  %2456 = vperm.xlu0 %2455, %v2369
  %v2457 = vpop.permute.xlu0 %2456
  %2459 = vset.pattern.permute.xlu0 1
  %2460 = vperm.xlu0 %2459, %v2370
  %v2461 = vpop.permute.xlu0 %2460
  %2463 = vset.pattern.permute.xlu0 1
  %2464 = vperm.xlu0 %2463, %v2371
  %v2465 = vpop.permute.xlu0 %2464
  %2467 = vset.pattern.permute.xlu0 1
  %2468 = vperm.xlu0 %2467, %v2372
  %v2469 = vpop.permute.xlu0 %2468
  %2471 = vset.pattern.permute.xlu0 1
  %2472 = vperm.xlu0 %2471, %v2373
  %v2473 = vpop.permute.xlu0 %2472
  %v2475 = vmul.f32 %v2445, %v1847
  %v2476 = vmul.f32 %v2449, %v1848
  %v2477 = vmul.f32 %v2453, %v1849
  %v2478 = vmul.f32 %v2457, %v1850
  %v2479 = vmul.f32 %v2461, %v1851
  %v2480 = vmul.f32 %v2465, %v1852
  %v2481 = vmul.f32 %v2469, %v1853
  %v2482 = vmul.f32 %v2473, %v1854
  %v2483 = vadd.f32 %v2435, %v2475
  %v2484 = vadd.f32 %v2436, %v2476
  %v2485 = vadd.f32 %v2437, %v2477
  %v2486 = vadd.f32 %v2438, %v2478
  %v2487 = vadd.f32 %v2439, %v2479
  %v2488 = vadd.f32 %v2440, %v2480
  %v2489 = vadd.f32 %v2441, %v2481
  %v2490 = vadd.f32 %v2442, %v2482
  %2491 = vst.msk [vmem:[%s9] sm:$0xff] %vm1863, %v1062
  %2492 = vst.msk [vmem:[%s9 + $0x8] sm:$0xff] %vm1863, %v1063
  %2493 = vst.msk [vmem:[%s9 + $0x10] sm:$0xff] %vm1863, %v1064
  %2494 = vst.msk [vmem:[%s9 + $0x18] sm:$0xff] %vm1863, %v1065
  %2495 = vst.msk [vmem:[%s9 + $0x20] sm:$0xff] %vm1863, %v1066
  %2496 = vst.msk [vmem:[%s9 + $0x28] sm:$0xff] %vm1863, %v1067
  %2497 = vst.msk [vmem:[%s9 + $0x30] sm:$0xff] %vm1863, %v1068
  %2498 = vst.msk [vmem:[%s9 + $0x38] sm:$0xff] %vm1863, %v1069
  %2499 = vrot.lane.b32.xlu0 %v1847, 32
  %v2500 = vpop.permute.xlu0 %2499
  %2501 = vrot.lane.b32.xlu0 %v1848, 32
  %v2502 = vpop.permute.xlu0 %2501
  %2503 = vrot.lane.b32.xlu0 %v1849, 32
  %v2504 = vpop.permute.xlu0 %2503
  %2505 = vrot.lane.b32.xlu0 %v1850, 32
  %v2506 = vpop.permute.xlu0 %2505
  %2507 = vrot.lane.b32.xlu0 %v1851, 32
  %v2508 = vpop.permute.xlu0 %2507
  %2509 = vrot.lane.b32.xlu0 %v1852, 32
  %v2510 = vpop.permute.xlu0 %2509
  %2511 = vrot.lane.b32.xlu0 %v1853, 32
  %v2512 = vpop.permute.xlu0 %2511
  %2513 = vrot.lane.b32.xlu0 %v1854, 32
  %v2514 = vpop.permute.xlu0 %2513
  %vm2523 = vcmask 523520
  %2524 = vst.msk [vmem:[%s9] sm:$0xff] %vm2523, %v2500
  %2525 = vst.msk [vmem:[%s9 + $0x8] sm:$0xff] %vm2523, %v2502
  %2526 = vst.msk [vmem:[%s9 + $0x10] sm:$0xff] %vm2523, %v2504
  %2527 = vst.msk [vmem:[%s9 + $0x18] sm:$0xff] %vm2523, %v2506
  %2528 = vst.msk [vmem:[%s9 + $0x20] sm:$0xff] %vm2523, %v2508
  %2529 = vst.msk [vmem:[%s9 + $0x28] sm:$0xff] %vm2523, %v2510
  %2530 = vst.msk [vmem:[%s9 + $0x30] sm:$0xff] %vm2523, %v2512
  %2531 = vst.msk [vmem:[%s9 + $0x38] sm:$0xff] %vm2523, %v2514
  %2540 = vrot.lane.b32.xlu0 %v2483, 64
  %v2541 = vpop.permute.xlu0 %2540
  %2542 = vrot.lane.b32.xlu0 %v2484, 64
  %v2543 = vpop.permute.xlu0 %2542
  %2544 = vrot.lane.b32.xlu0 %v2485, 64
  %v2545 = vpop.permute.xlu0 %2544
  %2546 = vrot.lane.b32.xlu0 %v2486, 64
  %v2547 = vpop.permute.xlu0 %2546
  %2548 = vrot.lane.b32.xlu0 %v2487, 64
  %v2549 = vpop.permute.xlu0 %2548
  %2550 = vrot.lane.b32.xlu0 %v2488, 64
  %v2551 = vpop.permute.xlu0 %2550
  %2552 = vrot.lane.b32.xlu0 %v2489, 64
  %v2553 = vpop.permute.xlu0 %2552
  %2554 = vrot.lane.b32.xlu0 %v2490, 64
  %v2555 = vpop.permute.xlu0 %2554
  %vm2564 = vcmask 785920
  %2565 = vst.msk [vmem:[%s9] sm:$0xff] %vm2564, %v2541
  %2566 = vst.msk [vmem:[%s9 + $0x8] sm:$0xff] %vm2564, %v2543
  %2567 = vst.msk [vmem:[%s9 + $0x10] sm:$0xff] %vm2564, %v2545
  %2568 = vst.msk [vmem:[%s9 + $0x18] sm:$0xff] %vm2564, %v2547
  %2569 = vst.msk [vmem:[%s9 + $0x20] sm:$0xff] %vm2564, %v2549
  %2570 = vst.msk [vmem:[%s9 + $0x28] sm:$0xff] %vm2564, %v2551
  %2571 = vst.msk [vmem:[%s9 + $0x30] sm:$0xff] %vm2564, %v2553
  %2572 = vst.msk [vmem:[%s9 + $0x38] sm:$0xff] %vm2564, %v2555
  %vm2573 = vcmask 1048320
  %2574 = vst.msk [vmem:[%s9] sm:$0xff] %vm2573, 0.0
  %2575 = vst.msk [vmem:[%s9 + $0x8] sm:$0xff] %vm2573, 0.0
  %2576 = vst.msk [vmem:[%s9 + $0x10] sm:$0xff] %vm2573, 0.0
  %2577 = vst.msk [vmem:[%s9 + $0x18] sm:$0xff] %vm2573, 0.0
  %2578 = vst.msk [vmem:[%s9 + $0x20] sm:$0xff] %vm2573, 0.0
  %2579 = vst.msk [vmem:[%s9 + $0x28] sm:$0xff] %vm2573, 0.0
  %2580 = vst.msk [vmem:[%s9 + $0x30] sm:$0xff] %vm2573, 0.0
  %2581 = vst.msk [vmem:[%s9 + $0x38] sm:$0xff] %vm2573, 0.0
  %vm2582 = vcmask 122880
  %2583 = vst.msk [vmem:[%s10] sm:$0x1] %vm2582, 0.0
  %vm2584 = vcmask 24576
  %2585 = vst.msk [vmem:[%s10] sm:$0x1] %vm2584, %v454
  %vm2586 = vcmask 57376
  %2587 = vst.msk [vmem:[%s10] sm:$0x1] %vm2586, %v1211
  %2589 = vrot.lane.b32.xlu0 %v2394, 8
  %v2590 = vpop.permute.xlu0 %2589
  %vm2592 = vcmask 73792
  %2593 = vst.msk [vmem:[%s10] sm:$0x1] %vm2592, %v2590
  // Predicated region
  $region38: #{mome_forward.1} parent=0 // pred_check
    _
  $region39: #{mome_forward.1} parent=0 // pred_check_branch
    %2595 = sbr.rel (0) target = $region41
  $region40: #{mome_forward.1} parent=0 // pred_region
    _
  $region41: #{mome_forward.1} parent=0 // pred_fallthru
    _
  // Predicated region
  $region42: #{mome_forward.1} parent=0 // pred_check
    _
  $region43: #{mome_forward.1} parent=0 // pred_check_branch
    %2597 = sbr.rel (0) target = $region45
  $region44: #{mome_forward.1} parent=0 // pred_region
    _
  $region45: #{mome_forward.1} parent=0 // pred_fallthru
    _
  // Predicated region
  $region46: #{mome_forward.1} parent=0 // pred_check
    _
  $region47: #{mome_forward.1} parent=0 // pred_check_branch
    %2599 = sbr.rel (0) target = $region49
  $region48: #{mome_forward.1} parent=0 // pred_region
    _
  $region49: #{mome_forward.1} parent=0 // pred_fallthru
    _
  // Predicated region
  $region50: #{mome_forward.1} parent=0 // pred_check
    _
  $region51: #{mome_forward.1} parent=0 // pred_check_branch
    %2601 = sbr.rel (0) target = $region53
  $region52: #{mome_forward.1} parent=0 // pred_region
    _
  $region53: #{mome_forward.1} parent=0 // pred_fallthru
    _

</llo_original>
